<compile_context>
chip_gen: v7x
topology: tpu7x:2x2x1
jax: 0.10.0
libtpu: 0.0.40
codegen_flags: <defaults>
</compile_context>

<pallas_src>
import jax
import jax.numpy as jnp
from jax.experimental import pallas as pl
from jax.experimental.pallas import tpu as pltpu  # noqa: F401

C_IN = 18                  # real input channels
C_PAD = 24                 # channels padded to a sublane multiple
L_IN = 320                 # input length
K = 5                      # conv kernel size
PAD = 2                    # conv padding ("same")
L_EXT = L_IN + 2 * PAD     # 324: extended conv1-output width (= padded conv2 input)
W_EXT = 384                # lane-aligned width (3 x 128) for the conv tiles
KROWS = 128                # K*C_PAD data rows + 1 indicator row, padded to 128
L_POOL = L_IN // 2         # 160 after AvgPool1d(2,2)
D_EMB = 64                 # transformer embedding dim
N_LAYERS = 4               # transformer layers
NEG_SLOPE = 0.01           # nn.LeakyReLU default
EPS = 1e-5                 # BatchNorm / LayerNorm eps


def _leaky(x):
    return jnp.where(x >= 0, x, NEG_SLOPE * x)


def _layernorm(h, g, b):
    mu = jnp.mean(h, axis=-1, keepdims=True)
    var = jnp.mean((h - mu) ** 2, axis=-1, keepdims=True)
    return (h - mu) * jax.lax.rsqrt(var + EPS) * g + b


# ------------------------------ fused kernel ------------------------------- #

def cet_s_kernel(xstack_ref, x_ref,
                 w1_ref, w2_ref, wres_ref, bn2h_ref,
                 pool_proj_ref, proj_b_ref,
                 tr_mats_ref, tr_vecs_ref,
                 whf_ref, bhf_ref,
                 out_ref):
    # conv1 + BN1 + edge zeroing: ONE bf16 matmul over the host-side im2col
    # stack (last column of w1 is the BN shift against the indicator row;
    # invalid columns of xstack are all-zero, so LeakyReLU(0)=0 there).
    y1 = _leaky(jnp.dot(w1_ref[...], xstack_ref[...],
                        preferred_element_type=jnp.float32))            # (24, 384)

    # conv2: all 5 taps in one matmul (BN2 scale folded into w2 rows), then
    # shift-slice the tiny (1, 320) partials instead of the (24, 320) operand.
    p = jnp.dot(w2_ref[...], y1, preferred_element_type=jnp.float32)    # (8, 384)
    res = jnp.dot(wres_ref[...], x_ref[...],
                  preferred_element_type=jnp.float32)                   # (1, 320)
    acc2 = res + bn2h_ref[...]
    for t in range(K):
        acc2 = acc2 + p[t:t + 1, t:t + L_IN]
    z = _leaky(acc2)                                                    # (1, 320)

    # AvgPool1d(2,2) + Flatten + Linear(160,64) folded into pool_proj (320,64).
    h = jnp.dot(z.astype(jnp.bfloat16), pool_proj_ref[...],
                preferred_element_type=jnp.float32) + proj_b_ref[...]   # (1, 64)

    # 4 transformer layers; seq_len==1 => attention is one matmul per layer.
    for l in range(N_LAYERS):
        mb, vb = 3 * l, 7 * l
        wvo = tr_mats_ref[mb + 0]
        fw1 = tr_mats_ref[mb + 1]
        fw2 = tr_mats_ref[mb + 2]
        bvo = tr_vecs_ref[vb + 0]
        ln1g = tr_vecs_ref[vb + 1]
        ln1b = tr_vecs_ref[vb + 2]
        fb1 = tr_vecs_ref[vb + 3]
        fb2 = tr_vecs_ref[vb + 4]
        ln2g = tr_vecs_ref[vb + 5]
        ln2b = tr_vecs_ref[vb + 6]

        attn = jnp.dot(h.astype(jnp.bfloat16), wvo,
                       preferred_element_type=jnp.float32) + bvo
        h = _layernorm(h + attn, ln1g, ln1b)
        ff = jnp.maximum(jnp.dot(h.astype(jnp.bfloat16), fw1,
                                 preferred_element_type=jnp.float32) + fb1, 0.0)
        ff = jnp.dot(ff.astype(jnp.bfloat16), fw2,
                     preferred_element_type=jnp.float32) + fb2
        h = _layernorm(h + ff, ln2g, ln2b)

    # transformer classifier head and CET_S.fc1 folded into a (64,2) matmul.
    out_ref[...] = (jnp.dot(h, whf_ref[...],
                            preferred_element_type=jnp.float32) + bhf_ref[...])


# ------------------------------- wrapper ----------------------------------- #

def _build_conv_inputs(x):
    """Host-side im2col for conv1 + an aligned raw-input copy for the residual."""
    xc = x[0].astype(jnp.float32)                                    # (18, 320)
    xpad = jnp.pad(xc, ((0, C_PAD - C_IN), (2 * PAD, 2 * PAD)))      # (24, 328)
    taps = [xpad[:, t:t + L_EXT] for t in range(K)]                  # 5 x (24, 324)
    col = jnp.arange(L_EXT)
    valid = ((col >= PAD) & (col < PAD + L_IN)).astype(jnp.float32)[None, :]
    stack = jnp.concatenate(taps + [valid], axis=0) * valid          # (121, 324)
    stack = jnp.pad(stack, ((0, KROWS - K * C_PAD - 1), (0, W_EXT - L_EXT)))
    x_al = xpad[:, 2 * PAD:2 * PAD + L_IN]                           # (24, 320)
    return stack.astype(jnp.bfloat16), x_al


def cet_s_forward(x, params):
    # x: (1, 18, 320) — PyTorch NCL (CET_S.DEFAULT_INPUT_SHAPE).
    xstack, x_al = _build_conv_inputs(x)
    out = pl.pallas_call(
        cet_s_kernel,
        out_shape=jax.ShapeDtypeStruct((1, 2), jnp.float32),
    )(xstack, x_al,
      params["w1aug"], params["w2s"], params["wres"], params["bn2h"],
      params["pool_proj"], params["proj_b"],
      params["tr_mats"], params["tr_vecs"],
      params["whf"], params["bhf"])
    return out.reshape(1, 1, 2)


# ------------------------------ parameters --------------------------------- #

def init_raw_params(key):
    """Unfolded parameters (math layout: weights are (in, out))."""
    ks = iter(jax.random.split(key, 80))

    def rnd(shape, scale=0.1):
        return scale * jax.random.normal(next(ks), shape, jnp.float32)

    def bn(n):
        return dict(gamma=1.0 + rnd((n,)), beta=rnd((n,)),
                    mean=rnd((n,)), var=1.0 + jnp.abs(rnd((n,))))

    layers = []
    for _ in range(N_LAYERS):
        layers.append(dict(
            wq=rnd((D_EMB, D_EMB)), wk=rnd((D_EMB, D_EMB)),
            wv=rnd((D_EMB, D_EMB)), wo=rnd((D_EMB, D_EMB)),
            bq=rnd((1, D_EMB)), bk=rnd((1, D_EMB)),
            bv=rnd((1, D_EMB)), bo=rnd((1, D_EMB)),
            ln1g=jnp.ones((1, D_EMB), jnp.float32),
            ln1b=jnp.zeros((1, D_EMB), jnp.float32),
            fw1=rnd((D_EMB, D_EMB)), fb1=rnd((1, D_EMB)),
            fw2=rnd((D_EMB, D_EMB)), fb2=rnd((1, D_EMB)),
            ln2g=jnp.ones((1, D_EMB), jnp.float32),
            ln2b=jnp.zeros((1, D_EMB), jnp.float32)))

    return dict(
        conv1_w=rnd((C_IN, C_IN, K)), bn1=bn(C_IN),
        conv2_w=rnd((1, C_IN, K)), bn2=bn(1),
        res_w=rnd((1, C_IN)),
        proj_w=rnd((L_POOL, D_EMB)), proj_b=rnd((1, D_EMB)),
        layers=layers,
        head_w=rnd((D_EMB, D_EMB)), head_b=rnd((1, D_EMB)),
        fc1_w=rnd((D_EMB, 2)), fc1_b=rnd((1, 2)))


def fold_params(raw):
    """Fold BN, edge mask, pooling, attention (seq_len==1) and head@fc1."""
    def bn_affine(bn):
        s = bn["gamma"] / jnp.sqrt(bn["var"] + EPS)
        return s, bn["beta"] - bn["mean"] * s

    bn1s, bn1h = bn_affine(raw["bn1"])
    bn2s, bn2h = bn_affine(raw["bn2"])

    # conv1 (+BN1) as one (24, 128) matrix: [5 taps x 24 ch | BN shift | pad].
    w1aug = jnp.zeros((C_PAD, KROWS), jnp.float32)
    for t in range(K):
        w1aug = w1aug.at[:C_IN, t * C_PAD:t * C_PAD + C_IN].set(
            bn1s[:, None] * raw["conv1_w"][:, :, t])
    w1aug = w1aug.at[:C_IN, K * C_PAD].set(bn1h)

    # conv2 taps (+BN2 scale) stacked row-wise -> (8, 24).
    w2s = jnp.zeros((8, C_PAD), jnp.float32)
    for t in range(K):
        w2s = w2s.at[t, :C_IN].set(bn2s[0] * raw["conv2_w"][0, :, t])

    wres = jnp.zeros((1, C_PAD), jnp.float32).at[:, :C_IN].set(raw["res_w"])

    # AvgPool1d(2,2) + Flatten + Linear(160,64) -> (320, 64).
    pool_mat = 0.5 * jnp.repeat(jnp.eye(L_POOL, dtype=jnp.float32), 2, axis=0)
    pool_proj = pool_mat @ raw["proj_w"]

    mats, vecs = [], []
    for lp in raw["layers"]:
        wvo = lp["wv"] @ lp["wo"]                  # attention folds (seq_len == 1)
        bvo = lp["bv"] @ lp["wo"] + lp["bo"]
        mats += [wvo, lp["fw1"], lp["fw2"]]
        vecs += [bvo, lp["ln1g"], lp["ln1b"], lp["fb1"], lp["fb2"],
                 lp["ln2g"], lp["ln2b"]]
    tr_mats = jnp.stack(mats).astype(jnp.bfloat16)      # (12, 64, 64)
    tr_vecs = jnp.stack(vecs)                           # (28, 1, 64)

    whf = raw["head_w"] @ raw["fc1_w"]                  # (64, 2)
    bhf = raw["head_b"] @ raw["fc1_w"] + raw["fc1_b"]   # (1, 2)

    return dict(w1aug=w1aug.astype(jnp.bfloat16), w2s=w2s, wres=wres,
                bn2h=bn2h.reshape(1, 1),
                pool_proj=pool_proj.astype(jnp.bfloat16), proj_b=raw["proj_b"],
                tr_mats=tr_mats, tr_vecs=tr_vecs, whf=whf, bhf=bhf)


# ----------------------- pure-JAX reference (unfolded) ---------------------- #

def cet_s_reference(x, raw):
    xc = x[0].astype(jnp.float32)                       # (18, 320)

    def conv1d(xin, w):                                 # w: (Cout, Cin, K), pad=2
        xp = jnp.pad(xin, ((0, 0), (PAD, PAD)))
        out = jnp.zeros((w.shape[0], xin.shape[1]), jnp.float32)
        for t in range(w.shape[2]):
            out = out + w[:, :, t] @ xp[:, t:t + xin.shape[1]]
        return out

    def bn_eval(v, bn):
        s = bn["gamma"] / jnp.sqrt(bn["var"] + EPS)
        return v * s[:, None] + (bn["beta"] - bn["mean"] * s)[:, None]

    y = _leaky(bn_eval(conv1d(xc, raw["conv1_w"]), raw["bn1"]))
    y = bn_eval(conv1d(y, raw["conv2_w"]), raw["bn2"])
    z = _leaky(y + raw["res_w"] @ xc)                   # (1, 320)
    pooled = 0.5 * (z[:, 0::2] + z[:, 1::2])            # (1, 160)
    h = pooled @ raw["proj_w"] + raw["proj_b"]          # (1, 64)

    inv = 1.0 / float(D_EMB) ** 0.5
    for lp in raw["layers"]:
        q = h @ lp["wq"] + lp["bq"]
        k = h @ lp["wk"] + lp["bk"]
        v = h @ lp["wv"] + lp["bv"]
        a = jax.nn.softmax((q @ k.T) * inv, axis=-1)    # (1,1) == 1
        attn = (a @ v) @ lp["wo"] + lp["bo"]
        h = _layernorm(h + attn, lp["ln1g"], lp["ln1b"])
        ff = jnp.maximum(h @ lp["fw1"] + lp["fb1"], 0.0) @ lp["fw2"] + lp["fb2"]
        h = _layernorm(h + ff, lp["ln2g"], lp["ln2b"])

    h = h @ raw["head_w"] + raw["head_b"]
    return (h @ raw["fc1_w"] + raw["fc1_b"]).reshape(1, 1, 2)


if __name__ == "__main__":
    key = jax.random.PRNGKey(0)
    pkey, xkey = jax.random.split(key)
    raw = init_raw_params(pkey)
    params = fold_params(raw)
    # Shapes fixed by the module (Linear(160,64) after /2 pooling):
    # CET_S.DEFAULT_INPUT_SHAPE = (1, 18, 320).
    x = jax.random.normal(xkey, (1, C_IN, L_IN), jnp.float32)

    fwd = jax.jit(cet_s_forward)
    out = fwd(x, params)
    jax.block_until_ready(out)

    ref = jax.jit(cet_s_reference)(x, raw)
    jax.block_until_ready(ref)

    assert out.shape == (1, 1, 2) and out.dtype == jnp.float32
    assert bool(jnp.all(jnp.isfinite(out)))
    # Loose tolerance: the kernel uses bf16 weight slabs / MXU inputs, the
    # reference is pure f32.  A structural bug would be orders larger.
    assert bool(jnp.all(jnp.abs(out - ref) <= 1e-1 + 1e-1 * jnp.abs(ref))), (out, ref)
    print("KERNEL_OK")
</pallas_src>

<mosaic_0001>
module attributes {stable_mosaic.version = 11 : i64} {
  func.func @cet_s_kernel(%arg0: memref<128x384xbf16, #tpu.memory_space<vmem>>, %arg1: memref<24x320xf32, #tpu.memory_space<vmem>>, %arg2: memref<24x128xbf16, #tpu.memory_space<vmem>>, %arg3: memref<8x24xf32, #tpu.memory_space<vmem>>, %arg4: memref<1x24xf32, #tpu.memory_space<vmem>>, %arg5: memref<1x1xf32, #tpu.memory_space<vmem>>, %arg6: memref<320x64xbf16, #tpu.memory_space<vmem>>, %arg7: memref<1x64xf32, #tpu.memory_space<vmem>>, %arg8: memref<12x64x64xbf16, #tpu.memory_space<vmem>>, %arg9: memref<28x1x64xf32, #tpu.memory_space<vmem>>, %arg10: memref<64x2xf32, #tpu.memory_space<vmem>>, %arg11: memref<1x2xf32, #tpu.memory_space<vmem>>, %arg12: memref<1x2xf32, #tpu.memory_space<vmem>>) attributes {dimension_semantics = [], scalar_prefetch = 0 : i64, scratch_operands = 0 : i64, tpu.core_type = #tpu.core_type<tc>} {
    %c0 = arith.constant 0 : index
    %c0_0 = arith.constant 0 : index
    %0 = vector.load %arg2[%c0, %c0_0] : memref<24x128xbf16, #tpu.memory_space<vmem>>, vector<24x128xbf16>
    %c0_1 = arith.constant 0 : index
    %c0_2 = arith.constant 0 : index
    %1 = vector.load %arg0[%c0_1, %c0_2] : memref<128x384xbf16, #tpu.memory_space<vmem>>, vector<128x384xbf16>
    %cst = arith.constant dense<0.000000e+00> : vector<24x384xf32>
    %2 = tpu.matmul %0, %1, %cst {dimension_numbers = #tpu.dot_dimension_numbers<[1], [0], [0], [1], [0, 0, 1, 1], [], []>} : vector<24x128xbf16>, vector<128x384xbf16>, vector<24x384xf32> -> vector<24x384xf32>
    %cst_3 = arith.constant 0.000000e+00 : f32
    %3 = vector.broadcast %cst_3 : f32 to vector<24x384xf32>
    %4 = arith.cmpf oge, %2, %3 : vector<24x384xf32>
    %cst_4 = arith.constant 0.00999999977 : f32
    %5 = vector.broadcast %cst_4 : f32 to vector<24x384xf32>
    %6 = arith.mulf %5, %2 : vector<24x384xf32>
    %7 = arith.select %4, %2, %6 : vector<24x384xi1>, vector<24x384xf32>
    %c0_5 = arith.constant 0 : index
    %c0_6 = arith.constant 0 : index
    %8 = vector.load %arg3[%c0_5, %c0_6] : memref<8x24xf32, #tpu.memory_space<vmem>>, vector<8x24xf32>
    %cst_7 = arith.constant dense<0.000000e+00> : vector<8x384xf32>
    %9 = tpu.matmul %8, %7, %cst_7 {dimension_numbers = #tpu.dot_dimension_numbers<[1], [0], [0], [1], [0, 0, 1, 1], [], []>} : vector<8x24xf32>, vector<24x384xf32>, vector<8x384xf32> -> vector<8x384xf32>
    %c0_8 = arith.constant 0 : index
    %c0_9 = arith.constant 0 : index
    %10 = vector.load %arg4[%c0_8, %c0_9] : memref<1x24xf32, #tpu.memory_space<vmem>>, vector<1x24xf32>
    %c0_10 = arith.constant 0 : index
    %c0_11 = arith.constant 0 : index
    %11 = vector.load %arg1[%c0_10, %c0_11] : memref<24x320xf32, #tpu.memory_space<vmem>>, vector<24x320xf32>
    %cst_12 = arith.constant dense<0.000000e+00> : vector<1x320xf32>
    %12 = tpu.matmul %10, %11, %cst_12 {dimension_numbers = #tpu.dot_dimension_numbers<[1], [0], [0], [1], [0, 0, 1, 1], [], []>} : vector<1x24xf32>, vector<24x320xf32>, vector<1x320xf32> -> vector<1x320xf32>
    %c0_13 = arith.constant 0 : index
    %c0_14 = arith.constant 0 : index
    %13 = vector.load %arg5[%c0_13, %c0_14] : memref<1x1xf32, #tpu.memory_space<vmem>>, vector<1x1xf32>
    %14 = vector.broadcast %13 : vector<1x1xf32> to vector<1x320xf32>
    %15 = arith.addf %12, %14 : vector<1x320xf32>
    %16 = vector.extract_strided_slice %9 {offsets = [0, 0], sizes = [1, 320], strides = [1, 1]} : vector<8x384xf32> to vector<1x320xf32>
    %17 = arith.addf %15, %16 : vector<1x320xf32>
    %18 = vector.extract_strided_slice %9 {offsets = [1, 1], sizes = [1, 320], strides = [1, 1]} : vector<8x384xf32> to vector<1x320xf32>
    %19 = arith.addf %17, %18 : vector<1x320xf32>
    %20 = vector.extract_strided_slice %9 {offsets = [2, 2], sizes = [1, 320], strides = [1, 1]} : vector<8x384xf32> to vector<1x320xf32>
    %21 = arith.addf %19, %20 : vector<1x320xf32>
    %22 = vector.extract_strided_slice %9 {offsets = [3, 3], sizes = [1, 320], strides = [1, 1]} : vector<8x384xf32> to vector<1x320xf32>
    %23 = arith.addf %21, %22 : vector<1x320xf32>
    %24 = vector.extract_strided_slice %9 {offsets = [4, 4], sizes = [1, 320], strides = [1, 1]} : vector<8x384xf32> to vector<1x320xf32>
    %25 = arith.addf %23, %24 : vector<1x320xf32>
    %cst_15 = arith.constant 0.000000e+00 : f32
    %26 = vector.broadcast %cst_15 : f32 to vector<1x320xf32>
    %27 = arith.cmpf oge, %25, %26 : vector<1x320xf32>
    %cst_16 = arith.constant 0.00999999977 : f32
    %28 = vector.broadcast %cst_16 : f32 to vector<1x320xf32>
    %29 = arith.mulf %28, %25 : vector<1x320xf32>
    %30 = arith.select %27, %25, %29 : vector<1x320xi1>, vector<1x320xf32>
    %31 = arith.truncf %30 : vector<1x320xf32> to vector<1x320xbf16>
    %c0_17 = arith.constant 0 : index
    %c0_18 = arith.constant 0 : index
    %32 = vector.load %arg6[%c0_17, %c0_18] : memref<320x64xbf16, #tpu.memory_space<vmem>>, vector<320x64xbf16>
    %cst_19 = arith.constant dense<0.000000e+00> : vector<1x64xf32>
    %33 = tpu.matmul %31, %32, %cst_19 {dimension_numbers = #tpu.dot_dimension_numbers<[1], [0], [0], [1], [0, 0, 1, 1], [], []>} : vector<1x320xbf16>, vector<320x64xbf16>, vector<1x64xf32> -> vector<1x64xf32>
    %c0_20 = arith.constant 0 : index
    %c0_21 = arith.constant 0 : index
    %34 = vector.load %arg7[%c0_20, %c0_21] : memref<1x64xf32, #tpu.memory_space<vmem>>, vector<1x64xf32>
    %35 = arith.addf %33, %34 : vector<1x64xf32>
    %c0_22 = arith.constant 0 : index
    %c0_23 = arith.constant 0 : index
    %c0_24 = arith.constant 0 : index
    %36 = vector.load %arg8[%c0_22, %c0_23, %c0_24] : memref<12x64x64xbf16, #tpu.memory_space<vmem>>, vector<1x64x64xbf16>
    %37 = vector.shape_cast %36 : vector<1x64x64xbf16> to vector<64x64xbf16>
    %c1 = arith.constant 1 : index
    %c0_25 = arith.constant 0 : index
    %c0_26 = arith.constant 0 : index
    %38 = vector.load %arg8[%c1, %c0_25, %c0_26] : memref<12x64x64xbf16, #tpu.memory_space<vmem>>, vector<1x64x64xbf16>
    %39 = vector.shape_cast %38 : vector<1x64x64xbf16> to vector<64x64xbf16>
    %c2 = arith.constant 2 : index
    %c0_27 = arith.constant 0 : index
    %c0_28 = arith.constant 0 : index
    %40 = vector.load %arg8[%c2, %c0_27, %c0_28] : memref<12x64x64xbf16, #tpu.memory_space<vmem>>, vector<1x64x64xbf16>
    %41 = vector.shape_cast %40 : vector<1x64x64xbf16> to vector<64x64xbf16>
    %c0_29 = arith.constant 0 : index
    %c0_30 = arith.constant 0 : index
    %c0_31 = arith.constant 0 : index
    %42 = vector.load %arg9[%c0_29, %c0_30, %c0_31] : memref<28x1x64xf32, #tpu.memory_space<vmem>>, vector<1x1x64xf32>
    %43 = vector.shape_cast %42 : vector<1x1x64xf32> to vector<1x64xf32>
    %c1_32 = arith.constant 1 : index
    %c0_33 = arith.constant 0 : index
    %c0_34 = arith.constant 0 : index
    %44 = vector.load %arg9[%c1_32, %c0_33, %c0_34] : memref<28x1x64xf32, #tpu.memory_space<vmem>>, vector<1x1x64xf32>
    %45 = vector.shape_cast %44 : vector<1x1x64xf32> to vector<1x64xf32>
    %c2_35 = arith.constant 2 : index
    %c0_36 = arith.constant 0 : index
    %c0_37 = arith.constant 0 : index
    %46 = vector.load %arg9[%c2_35, %c0_36, %c0_37] : memref<28x1x64xf32, #tpu.memory_space<vmem>>, vector<1x1x64xf32>
    %47 = vector.shape_cast %46 : vector<1x1x64xf32> to vector<1x64xf32>
    %c3 = arith.constant 3 : index
    %c0_38 = arith.constant 0 : index
    %c0_39 = arith.constant 0 : index
    %48 = vector.load %arg9[%c3, %c0_38, %c0_39] : memref<28x1x64xf32, #tpu.memory_space<vmem>>, vector<1x1x64xf32>
    %49 = vector.shape_cast %48 : vector<1x1x64xf32> to vector<1x64xf32>
    %c4 = arith.constant 4 : index
    %c0_40 = arith.constant 0 : index
    %c0_41 = arith.constant 0 : index
    %50 = vector.load %arg9[%c4, %c0_40, %c0_41] : memref<28x1x64xf32, #tpu.memory_space<vmem>>, vector<1x1x64xf32>
    %51 = vector.shape_cast %50 : vector<1x1x64xf32> to vector<1x64xf32>
    %c5 = arith.constant 5 : index
    %c0_42 = arith.constant 0 : index
    %c0_43 = arith.constant 0 : index
    %52 = vector.load %arg9[%c5, %c0_42, %c0_43] : memref<28x1x64xf32, #tpu.memory_space<vmem>>, vector<1x1x64xf32>
    %53 = vector.shape_cast %52 : vector<1x1x64xf32> to vector<1x64xf32>
    %c6 = arith.constant 6 : index
    %c0_44 = arith.constant 0 : index
    %c0_45 = arith.constant 0 : index
    %54 = vector.load %arg9[%c6, %c0_44, %c0_45] : memref<28x1x64xf32, #tpu.memory_space<vmem>>, vector<1x1x64xf32>
    %55 = vector.shape_cast %54 : vector<1x1x64xf32> to vector<1x64xf32>
    %56 = arith.truncf %35 : vector<1x64xf32> to vector<1x64xbf16>
    %cst_46 = arith.constant dense<0.000000e+00> : vector<1x64xf32>
    %57 = tpu.matmul %56, %37, %cst_46 {dimension_numbers = #tpu.dot_dimension_numbers<[1], [0], [0], [1], [0, 0, 1, 1], [], []>} : vector<1x64xbf16>, vector<64x64xbf16>, vector<1x64xf32> -> vector<1x64xf32>
    %58 = arith.addf %57, %43 : vector<1x64xf32>
    %59 = arith.addf %35, %58 : vector<1x64xf32>
    %cst_47 = arith.constant dense<0.000000e+00> : vector<1xf32>
    %60 = vector.multi_reduction <add>, %59, %cst_47 [1] : vector<1x64xf32> to vector<1xf32>
    %61 = vector.shape_cast %60 : vector<1xf32> to vector<1x1xf32>
    %cst_48 = arith.constant 6.400000e+01 : f32
    %62 = vector.broadcast %cst_48 : f32 to vector<1x1xf32>
    %63 = arith.divf %61, %62 : vector<1x1xf32>
    %64 = vector.broadcast %63 : vector<1x1xf32> to vector<1x64xf32>
    %65 = arith.subf %59, %64 : vector<1x64xf32>
    %66 = arith.mulf %65, %65 : vector<1x64xf32>
    %cst_49 = arith.constant dense<0.000000e+00> : vector<1xf32>
    %67 = vector.multi_reduction <add>, %66, %cst_49 [1] : vector<1x64xf32> to vector<1xf32>
    %68 = vector.shape_cast %67 : vector<1xf32> to vector<1x1xf32>
    %cst_50 = arith.constant 6.400000e+01 : f32
    %69 = vector.broadcast %cst_50 : f32 to vector<1x1xf32>
    %70 = arith.divf %68, %69 : vector<1x1xf32>
    %71 = vector.broadcast %63 : vector<1x1xf32> to vector<1x64xf32>
    %72 = arith.subf %59, %71 : vector<1x64xf32>
    %cst_51 = arith.constant 9.99999974E-6 : f32
    %73 = vector.broadcast %cst_51 : f32 to vector<1x1xf32>
    %74 = arith.addf %70, %73 : vector<1x1xf32>
    %75 = math.rsqrt %74 : vector<1x1xf32>
    %76 = vector.broadcast %75 : vector<1x1xf32> to vector<1x64xf32>
    %77 = arith.mulf %72, %76 : vector<1x64xf32>
    %78 = arith.mulf %77, %45 : vector<1x64xf32>
    %79 = arith.addf %78, %47 : vector<1x64xf32>
    %80 = arith.truncf %79 : vector<1x64xf32> to vector<1x64xbf16>
    %cst_52 = arith.constant dense<0.000000e+00> : vector<1x64xf32>
    %81 = tpu.matmul %80, %39, %cst_52 {dimension_numbers = #tpu.dot_dimension_numbers<[1], [0], [0], [1], [0, 0, 1, 1], [], []>} : vector<1x64xbf16>, vector<64x64xbf16>, vector<1x64xf32> -> vector<1x64xf32>
    %82 = arith.addf %81, %49 : vector<1x64xf32>
    %cst_53 = arith.constant 0.000000e+00 : f32
    %83 = vector.broadcast %cst_53 : f32 to vector<1x64xf32>
    %84 = arith.maximumf %82, %83 : vector<1x64xf32>
    %85 = arith.truncf %84 : vector<1x64xf32> to vector<1x64xbf16>
    %cst_54 = arith.constant dense<0.000000e+00> : vector<1x64xf32>
    %86 = tpu.matmul %85, %41, %cst_54 {dimension_numbers = #tpu.dot_dimension_numbers<[1], [0], [0], [1], [0, 0, 1, 1], [], []>} : vector<1x64xbf16>, vector<64x64xbf16>, vector<1x64xf32> -> vector<1x64xf32>
    %87 = arith.addf %86, %51 : vector<1x64xf32>
    %88 = arith.addf %79, %87 : vector<1x64xf32>
    %cst_55 = arith.constant dense<0.000000e+00> : vector<1xf32>
    %89 = vector.multi_reduction <add>, %88, %cst_55 [1] : vector<1x64xf32> to vector<1xf32>
    %90 = vector.shape_cast %89 : vector<1xf32> to vector<1x1xf32>
    %cst_56 = arith.constant 6.400000e+01 : f32
    %91 = vector.broadcast %cst_56 : f32 to vector<1x1xf32>
    %92 = arith.divf %90, %91 : vector<1x1xf32>
    %93 = vector.broadcast %92 : vector<1x1xf32> to vector<1x64xf32>
    %94 = arith.subf %88, %93 : vector<1x64xf32>
    %95 = arith.mulf %94, %94 : vector<1x64xf32>
    %cst_57 = arith.constant dense<0.000000e+00> : vector<1xf32>
    %96 = vector.multi_reduction <add>, %95, %cst_57 [1] : vector<1x64xf32> to vector<1xf32>
    %97 = vector.shape_cast %96 : vector<1xf32> to vector<1x1xf32>
    %cst_58 = arith.constant 6.400000e+01 : f32
    %98 = vector.broadcast %cst_58 : f32 to vector<1x1xf32>
    %99 = arith.divf %97, %98 : vector<1x1xf32>
    %100 = vector.broadcast %92 : vector<1x1xf32> to vector<1x64xf32>
    %101 = arith.subf %88, %100 : vector<1x64xf32>
    %cst_59 = arith.constant 9.99999974E-6 : f32
    %102 = vector.broadcast %cst_59 : f32 to vector<1x1xf32>
    %103 = arith.addf %99, %102 : vector<1x1xf32>
    %104 = math.rsqrt %103 : vector<1x1xf32>
    %105 = vector.broadcast %104 : vector<1x1xf32> to vector<1x64xf32>
    %106 = arith.mulf %101, %105 : vector<1x64xf32>
    %107 = arith.mulf %106, %53 : vector<1x64xf32>
    %108 = arith.addf %107, %55 : vector<1x64xf32>
    %c3_60 = arith.constant 3 : index
    %c0_61 = arith.constant 0 : index
    %c0_62 = arith.constant 0 : index
    %109 = vector.load %arg8[%c3_60, %c0_61, %c0_62] : memref<12x64x64xbf16, #tpu.memory_space<vmem>>, vector<1x64x64xbf16>
    %110 = vector.shape_cast %109 : vector<1x64x64xbf16> to vector<64x64xbf16>
    %c4_63 = arith.constant 4 : index
    %c0_64 = arith.constant 0 : index
    %c0_65 = arith.constant 0 : index
    %111 = vector.load %arg8[%c4_63, %c0_64, %c0_65] : memref<12x64x64xbf16, #tpu.memory_space<vmem>>, vector<1x64x64xbf16>
    %112 = vector.shape_cast %111 : vector<1x64x64xbf16> to vector<64x64xbf16>
    %c5_66 = arith.constant 5 : index
    %c0_67 = arith.constant 0 : index
    %c0_68 = arith.constant 0 : index
    %113 = vector.load %arg8[%c5_66, %c0_67, %c0_68] : memref<12x64x64xbf16, #tpu.memory_space<vmem>>, vector<1x64x64xbf16>
    %114 = vector.shape_cast %113 : vector<1x64x64xbf16> to vector<64x64xbf16>
    %c7 = arith.constant 7 : index
    %c0_69 = arith.constant 0 : index
    %c0_70 = arith.constant 0 : index
    %115 = vector.load %arg9[%c7, %c0_69, %c0_70] : memref<28x1x64xf32, #tpu.memory_space<vmem>>, vector<1x1x64xf32>
    %116 = vector.shape_cast %115 : vector<1x1x64xf32> to vector<1x64xf32>
    %c8 = arith.constant 8 : index
    %c0_71 = arith.constant 0 : index
    %c0_72 = arith.constant 0 : index
    %117 = vector.load %arg9[%c8, %c0_71, %c0_72] : memref<28x1x64xf32, #tpu.memory_space<vmem>>, vector<1x1x64xf32>
    %118 = vector.shape_cast %117 : vector<1x1x64xf32> to vector<1x64xf32>
    %c9 = arith.constant 9 : index
    %c0_73 = arith.constant 0 : index
    %c0_74 = arith.constant 0 : index
    %119 = vector.load %arg9[%c9, %c0_73, %c0_74] : memref<28x1x64xf32, #tpu.memory_space<vmem>>, vector<1x1x64xf32>
    %120 = vector.shape_cast %119 : vector<1x1x64xf32> to vector<1x64xf32>
    %c10 = arith.constant 10 : index
    %c0_75 = arith.constant 0 : index
    %c0_76 = arith.constant 0 : index
    %121 = vector.load %arg9[%c10, %c0_75, %c0_76] : memref<28x1x64xf32, #tpu.memory_space<vmem>>, vector<1x1x64xf32>
    %122 = vector.shape_cast %121 : vector<1x1x64xf32> to vector<1x64xf32>
    %c11 = arith.constant 11 : index
    %c0_77 = arith.constant 0 : index
    %c0_78 = arith.constant 0 : index
    %123 = vector.load %arg9[%c11, %c0_77, %c0_78] : memref<28x1x64xf32, #tpu.memory_space<vmem>>, vector<1x1x64xf32>
    %124 = vector.shape_cast %123 : vector<1x1x64xf32> to vector<1x64xf32>
    %c12 = arith.constant 12 : index
    %c0_79 = arith.constant 0 : index
    %c0_80 = arith.constant 0 : index
    %125 = vector.load %arg9[%c12, %c0_79, %c0_80] : memref<28x1x64xf32, #tpu.memory_space<vmem>>, vector<1x1x64xf32>
    %126 = vector.shape_cast %125 : vector<1x1x64xf32> to vector<1x64xf32>
    %c13 = arith.constant 13 : index
    %c0_81 = arith.constant 0 : index
    %c0_82 = arith.constant 0 : index
    %127 = vector.load %arg9[%c13, %c0_81, %c0_82] : memref<28x1x64xf32, #tpu.memory_space<vmem>>, vector<1x1x64xf32>
    %128 = vector.shape_cast %127 : vector<1x1x64xf32> to vector<1x64xf32>
    %129 = arith.truncf %108 : vector<1x64xf32> to vector<1x64xbf16>
    %cst_83 = arith.constant dense<0.000000e+00> : vector<1x64xf32>
    %130 = tpu.matmul %129, %110, %cst_83 {dimension_numbers = #tpu.dot_dimension_numbers<[1], [0], [0], [1], [0, 0, 1, 1], [], []>} : vector<1x64xbf16>, vector<64x64xbf16>, vector<1x64xf32> -> vector<1x64xf32>
    %131 = arith.addf %130, %116 : vector<1x64xf32>
    %132 = arith.addf %108, %131 : vector<1x64xf32>
    %cst_84 = arith.constant dense<0.000000e+00> : vector<1xf32>
    %133 = vector.multi_reduction <add>, %132, %cst_84 [1] : vector<1x64xf32> to vector<1xf32>
    %134 = vector.shape_cast %133 : vector<1xf32> to vector<1x1xf32>
    %cst_85 = arith.constant 6.400000e+01 : f32
    %135 = vector.broadcast %cst_85 : f32 to vector<1x1xf32>
    %136 = arith.divf %134, %135 : vector<1x1xf32>
    %137 = vector.broadcast %136 : vector<1x1xf32> to vector<1x64xf32>
    %138 = arith.subf %132, %137 : vector<1x64xf32>
    %139 = arith.mulf %138, %138 : vector<1x64xf32>
    %cst_86 = arith.constant dense<0.000000e+00> : vector<1xf32>
    %140 = vector.multi_reduction <add>, %139, %cst_86 [1] : vector<1x64xf32> to vector<1xf32>
    %141 = vector.shape_cast %140 : vector<1xf32> to vector<1x1xf32>
    %cst_87 = arith.constant 6.400000e+01 : f32
    %142 = vector.broadcast %cst_87 : f32 to vector<1x1xf32>
    %143 = arith.divf %141, %142 : vector<1x1xf32>
    %144 = vector.broadcast %136 : vector<1x1xf32> to vector<1x64xf32>
    %145 = arith.subf %132, %144 : vector<1x64xf32>
    %cst_88 = arith.constant 9.99999974E-6 : f32
    %146 = vector.broadcast %cst_88 : f32 to vector<1x1xf32>
    %147 = arith.addf %143, %146 : vector<1x1xf32>
    %148 = math.rsqrt %147 : vector<1x1xf32>
    %149 = vector.broadcast %148 : vector<1x1xf32> to vector<1x64xf32>
    %150 = arith.mulf %145, %149 : vector<1x64xf32>
    %151 = arith.mulf %150, %118 : vector<1x64xf32>
    %152 = arith.addf %151, %120 : vector<1x64xf32>
    %153 = arith.truncf %152 : vector<1x64xf32> to vector<1x64xbf16>
    %cst_89 = arith.constant dense<0.000000e+00> : vector<1x64xf32>
    %154 = tpu.matmul %153, %112, %cst_89 {dimension_numbers = #tpu.dot_dimension_numbers<[1], [0], [0], [1], [0, 0, 1, 1], [], []>} : vector<1x64xbf16>, vector<64x64xbf16>, vector<1x64xf32> -> vector<1x64xf32>
    %155 = arith.addf %154, %122 : vector<1x64xf32>
    %cst_90 = arith.constant 0.000000e+00 : f32
    %156 = vector.broadcast %cst_90 : f32 to vector<1x64xf32>
    %157 = arith.maximumf %155, %156 : vector<1x64xf32>
    %158 = arith.truncf %157 : vector<1x64xf32> to vector<1x64xbf16>
    %cst_91 = arith.constant dense<0.000000e+00> : vector<1x64xf32>
    %159 = tpu.matmul %158, %114, %cst_91 {dimension_numbers = #tpu.dot_dimension_numbers<[1], [0], [0], [1], [0, 0, 1, 1], [], []>} : vector<1x64xbf16>, vector<64x64xbf16>, vector<1x64xf32> -> vector<1x64xf32>
    %160 = arith.addf %159, %124 : vector<1x64xf32>
    %161 = arith.addf %152, %160 : vector<1x64xf32>
    %cst_92 = arith.constant dense<0.000000e+00> : vector<1xf32>
    %162 = vector.multi_reduction <add>, %161, %cst_92 [1] : vector<1x64xf32> to vector<1xf32>
    %163 = vector.shape_cast %162 : vector<1xf32> to vector<1x1xf32>
    %cst_93 = arith.constant 6.400000e+01 : f32
    %164 = vector.broadcast %cst_93 : f32 to vector<1x1xf32>
    %165 = arith.divf %163, %164 : vector<1x1xf32>
    %166 = vector.broadcast %165 : vector<1x1xf32> to vector<1x64xf32>
    %167 = arith.subf %161, %166 : vector<1x64xf32>
    %168 = arith.mulf %167, %167 : vector<1x64xf32>
    %cst_94 = arith.constant dense<0.000000e+00> : vector<1xf32>
    %169 = vector.multi_reduction <add>, %168, %cst_94 [1] : vector<1x64xf32> to vector<1xf32>
    %170 = vector.shape_cast %169 : vector<1xf32> to vector<1x1xf32>
    %cst_95 = arith.constant 6.400000e+01 : f32
    %171 = vector.broadcast %cst_95 : f32 to vector<1x1xf32>
    %172 = arith.divf %170, %171 : vector<1x1xf32>
    %173 = vector.broadcast %165 : vector<1x1xf32> to vector<1x64xf32>
    %174 = arith.subf %161, %173 : vector<1x64xf32>
    %cst_96 = arith.constant 9.99999974E-6 : f32
    %175 = vector.broadcast %cst_96 : f32 to vector<1x1xf32>
    %176 = arith.addf %172, %175 : vector<1x1xf32>
    %177 = math.rsqrt %176 : vector<1x1xf32>
    %178 = vector.broadcast %177 : vector<1x1xf32> to vector<1x64xf32>
    %179 = arith.mulf %174, %178 : vector<1x64xf32>
    %180 = arith.mulf %179, %126 : vector<1x64xf32>
    %181 = arith.addf %180, %128 : vector<1x64xf32>
    %c6_97 = arith.constant 6 : index
    %c0_98 = arith.constant 0 : index
    %c0_99 = arith.constant 0 : index
    %182 = vector.load %arg8[%c6_97, %c0_98, %c0_99] : memref<12x64x64xbf16, #tpu.memory_space<vmem>>, vector<1x64x64xbf16>
    %183 = vector.shape_cast %182 : vector<1x64x64xbf16> to vector<64x64xbf16>
    %c7_100 = arith.constant 7 : index
    %c0_101 = arith.constant 0 : index
    %c0_102 = arith.constant 0 : index
    %184 = vector.load %arg8[%c7_100, %c0_101, %c0_102] : memref<12x64x64xbf16, #tpu.memory_space<vmem>>, vector<1x64x64xbf16>
    %185 = vector.shape_cast %184 : vector<1x64x64xbf16> to vector<64x64xbf16>
    %c8_103 = arith.constant 8 : index
    %c0_104 = arith.constant 0 : index
    %c0_105 = arith.constant 0 : index
    %186 = vector.load %arg8[%c8_103, %c0_104, %c0_105] : memref<12x64x64xbf16, #tpu.memory_space<vmem>>, vector<1x64x64xbf16>
    %187 = vector.shape_cast %186 : vector<1x64x64xbf16> to vector<64x64xbf16>
    %c14 = arith.constant 14 : index
    %c0_106 = arith.constant 0 : index
    %c0_107 = arith.constant 0 : index
    %188 = vector.load %arg9[%c14, %c0_106, %c0_107] : memref<28x1x64xf32, #tpu.memory_space<vmem>>, vector<1x1x64xf32>
    %189 = vector.shape_cast %188 : vector<1x1x64xf32> to vector<1x64xf32>
    %c15 = arith.constant 15 : index
    %c0_108 = arith.constant 0 : index
    %c0_109 = arith.constant 0 : index
    %190 = vector.load %arg9[%c15, %c0_108, %c0_109] : memref<28x1x64xf32, #tpu.memory_space<vmem>>, vector<1x1x64xf32>
    %191 = vector.shape_cast %190 : vector<1x1x64xf32> to vector<1x64xf32>
    %c16 = arith.constant 16 : index
    %c0_110 = arith.constant 0 : index
    %c0_111 = arith.constant 0 : index
    %192 = vector.load %arg9[%c16, %c0_110, %c0_111] : memref<28x1x64xf32, #tpu.memory_space<vmem>>, vector<1x1x64xf32>
    %193 = vector.shape_cast %192 : vector<1x1x64xf32> to vector<1x64xf32>
    %c17 = arith.constant 17 : index
    %c0_112 = arith.constant 0 : index
    %c0_113 = arith.constant 0 : index
    %194 = vector.load %arg9[%c17, %c0_112, %c0_113] : memref<28x1x64xf32, #tpu.memory_space<vmem>>, vector<1x1x64xf32>
    %195 = vector.shape_cast %194 : vector<1x1x64xf32> to vector<1x64xf32>
    %c18 = arith.constant 18 : index
    %c0_114 = arith.constant 0 : index
    %c0_115 = arith.constant 0 : index
    %196 = vector.load %arg9[%c18, %c0_114, %c0_115] : memref<28x1x64xf32, #tpu.memory_space<vmem>>, vector<1x1x64xf32>
    %197 = vector.shape_cast %196 : vector<1x1x64xf32> to vector<1x64xf32>
    %c19 = arith.constant 19 : index
    %c0_116 = arith.constant 0 : index
    %c0_117 = arith.constant 0 : index
    %198 = vector.load %arg9[%c19, %c0_116, %c0_117] : memref<28x1x64xf32, #tpu.memory_space<vmem>>, vector<1x1x64xf32>
    %199 = vector.shape_cast %198 : vector<1x1x64xf32> to vector<1x64xf32>
    %c20 = arith.constant 20 : index
    %c0_118 = arith.constant 0 : index
    %c0_119 = arith.constant 0 : index
    %200 = vector.load %arg9[%c20, %c0_118, %c0_119] : memref<28x1x64xf32, #tpu.memory_space<vmem>>, vector<1x1x64xf32>
    %201 = vector.shape_cast %200 : vector<1x1x64xf32> to vector<1x64xf32>
    %202 = arith.truncf %181 : vector<1x64xf32> to vector<1x64xbf16>
    %cst_120 = arith.constant dense<0.000000e+00> : vector<1x64xf32>
    %203 = tpu.matmul %202, %183, %cst_120 {dimension_numbers = #tpu.dot_dimension_numbers<[1], [0], [0], [1], [0, 0, 1, 1], [], []>} : vector<1x64xbf16>, vector<64x64xbf16>, vector<1x64xf32> -> vector<1x64xf32>
    %204 = arith.addf %203, %189 : vector<1x64xf32>
    %205 = arith.addf %181, %204 : vector<1x64xf32>
    %cst_121 = arith.constant dense<0.000000e+00> : vector<1xf32>
    %206 = vector.multi_reduction <add>, %205, %cst_121 [1] : vector<1x64xf32> to vector<1xf32>
    %207 = vector.shape_cast %206 : vector<1xf32> to vector<1x1xf32>
    %cst_122 = arith.constant 6.400000e+01 : f32
    %208 = vector.broadcast %cst_122 : f32 to vector<1x1xf32>
    %209 = arith.divf %207, %208 : vector<1x1xf32>
    %210 = vector.broadcast %209 : vector<1x1xf32> to vector<1x64xf32>
    %211 = arith.subf %205, %210 : vector<1x64xf32>
    %212 = arith.mulf %211, %211 : vector<1x64xf32>
    %cst_123 = arith.constant dense<0.000000e+00> : vector<1xf32>
    %213 = vector.multi_reduction <add>, %212, %cst_123 [1] : vector<1x64xf32> to vector<1xf32>
    %214 = vector.shape_cast %213 : vector<1xf32> to vector<1x1xf32>
    %cst_124 = arith.constant 6.400000e+01 : f32
    %215 = vector.broadcast %cst_124 : f32 to vector<1x1xf32>
    %216 = arith.divf %214, %215 : vector<1x1xf32>
    %217 = vector.broadcast %209 : vector<1x1xf32> to vector<1x64xf32>
    %218 = arith.subf %205, %217 : vector<1x64xf32>
    %cst_125 = arith.constant 9.99999974E-6 : f32
    %219 = vector.broadcast %cst_125 : f32 to vector<1x1xf32>
    %220 = arith.addf %216, %219 : vector<1x1xf32>
    %221 = math.rsqrt %220 : vector<1x1xf32>
    %222 = vector.broadcast %221 : vector<1x1xf32> to vector<1x64xf32>
    %223 = arith.mulf %218, %222 : vector<1x64xf32>
    %224 = arith.mulf %223, %191 : vector<1x64xf32>
    %225 = arith.addf %224, %193 : vector<1x64xf32>
    %226 = arith.truncf %225 : vector<1x64xf32> to vector<1x64xbf16>
    %cst_126 = arith.constant dense<0.000000e+00> : vector<1x64xf32>
    %227 = tpu.matmul %226, %185, %cst_126 {dimension_numbers = #tpu.dot_dimension_numbers<[1], [0], [0], [1], [0, 0, 1, 1], [], []>} : vector<1x64xbf16>, vector<64x64xbf16>, vector<1x64xf32> -> vector<1x64xf32>
    %228 = arith.addf %227, %195 : vector<1x64xf32>
    %cst_127 = arith.constant 0.000000e+00 : f32
    %229 = vector.broadcast %cst_127 : f32 to vector<1x64xf32>
    %230 = arith.maximumf %228, %229 : vector<1x64xf32>
    %231 = arith.truncf %230 : vector<1x64xf32> to vector<1x64xbf16>
    %cst_128 = arith.constant dense<0.000000e+00> : vector<1x64xf32>
    %232 = tpu.matmul %231, %187, %cst_128 {dimension_numbers = #tpu.dot_dimension_numbers<[1], [0], [0], [1], [0, 0, 1, 1], [], []>} : vector<1x64xbf16>, vector<64x64xbf16>, vector<1x64xf32> -> vector<1x64xf32>
    %233 = arith.addf %232, %197 : vector<1x64xf32>
    %234 = arith.addf %225, %233 : vector<1x64xf32>
    %cst_129 = arith.constant dense<0.000000e+00> : vector<1xf32>
    %235 = vector.multi_reduction <add>, %234, %cst_129 [1] : vector<1x64xf32> to vector<1xf32>
    %236 = vector.shape_cast %235 : vector<1xf32> to vector<1x1xf32>
    %cst_130 = arith.constant 6.400000e+01 : f32
    %237 = vector.broadcast %cst_130 : f32 to vector<1x1xf32>
    %238 = arith.divf %236, %237 : vector<1x1xf32>
    %239 = vector.broadcast %238 : vector<1x1xf32> to vector<1x64xf32>
    %240 = arith.subf %234, %239 : vector<1x64xf32>
    %241 = arith.mulf %240, %240 : vector<1x64xf32>
    %cst_131 = arith.constant dense<0.000000e+00> : vector<1xf32>
    %242 = vector.multi_reduction <add>, %241, %cst_131 [1] : vector<1x64xf32> to vector<1xf32>
    %243 = vector.shape_cast %242 : vector<1xf32> to vector<1x1xf32>
    %cst_132 = arith.constant 6.400000e+01 : f32
    %244 = vector.broadcast %cst_132 : f32 to vector<1x1xf32>
    %245 = arith.divf %243, %244 : vector<1x1xf32>
    %246 = vector.broadcast %238 : vector<1x1xf32> to vector<1x64xf32>
    %247 = arith.subf %234, %246 : vector<1x64xf32>
    %cst_133 = arith.constant 9.99999974E-6 : f32
    %248 = vector.broadcast %cst_133 : f32 to vector<1x1xf32>
    %249 = arith.addf %245, %248 : vector<1x1xf32>
    %250 = math.rsqrt %249 : vector<1x1xf32>
    %251 = vector.broadcast %250 : vector<1x1xf32> to vector<1x64xf32>
    %252 = arith.mulf %247, %251 : vector<1x64xf32>
    %253 = arith.mulf %252, %199 : vector<1x64xf32>
    %254 = arith.addf %253, %201 : vector<1x64xf32>
    %c9_134 = arith.constant 9 : index
    %c0_135 = arith.constant 0 : index
    %c0_136 = arith.constant 0 : index
    %255 = vector.load %arg8[%c9_134, %c0_135, %c0_136] : memref<12x64x64xbf16, #tpu.memory_space<vmem>>, vector<1x64x64xbf16>
    %256 = vector.shape_cast %255 : vector<1x64x64xbf16> to vector<64x64xbf16>
    %c10_137 = arith.constant 10 : index
    %c0_138 = arith.constant 0 : index
    %c0_139 = arith.constant 0 : index
    %257 = vector.load %arg8[%c10_137, %c0_138, %c0_139] : memref<12x64x64xbf16, #tpu.memory_space<vmem>>, vector<1x64x64xbf16>
    %258 = vector.shape_cast %257 : vector<1x64x64xbf16> to vector<64x64xbf16>
    %c11_140 = arith.constant 11 : index
    %c0_141 = arith.constant 0 : index
    %c0_142 = arith.constant 0 : index
    %259 = vector.load %arg8[%c11_140, %c0_141, %c0_142] : memref<12x64x64xbf16, #tpu.memory_space<vmem>>, vector<1x64x64xbf16>
    %260 = vector.shape_cast %259 : vector<1x64x64xbf16> to vector<64x64xbf16>
    %c21 = arith.constant 21 : index
    %c0_143 = arith.constant 0 : index
    %c0_144 = arith.constant 0 : index
    %261 = vector.load %arg9[%c21, %c0_143, %c0_144] : memref<28x1x64xf32, #tpu.memory_space<vmem>>, vector<1x1x64xf32>
    %262 = vector.shape_cast %261 : vector<1x1x64xf32> to vector<1x64xf32>
    %c22 = arith.constant 22 : index
    %c0_145 = arith.constant 0 : index
    %c0_146 = arith.constant 0 : index
    %263 = vector.load %arg9[%c22, %c0_145, %c0_146] : memref<28x1x64xf32, #tpu.memory_space<vmem>>, vector<1x1x64xf32>
    %264 = vector.shape_cast %263 : vector<1x1x64xf32> to vector<1x64xf32>
    %c23 = arith.constant 23 : index
    %c0_147 = arith.constant 0 : index
    %c0_148 = arith.constant 0 : index
    %265 = vector.load %arg9[%c23, %c0_147, %c0_148] : memref<28x1x64xf32, #tpu.memory_space<vmem>>, vector<1x1x64xf32>
    %266 = vector.shape_cast %265 : vector<1x1x64xf32> to vector<1x64xf32>
    %c24 = arith.constant 24 : index
    %c0_149 = arith.constant 0 : index
    %c0_150 = arith.constant 0 : index
    %267 = vector.load %arg9[%c24, %c0_149, %c0_150] : memref<28x1x64xf32, #tpu.memory_space<vmem>>, vector<1x1x64xf32>
    %268 = vector.shape_cast %267 : vector<1x1x64xf32> to vector<1x64xf32>
    %c25 = arith.constant 25 : index
    %c0_151 = arith.constant 0 : index
    %c0_152 = arith.constant 0 : index
    %269 = vector.load %arg9[%c25, %c0_151, %c0_152] : memref<28x1x64xf32, #tpu.memory_space<vmem>>, vector<1x1x64xf32>
    %270 = vector.shape_cast %269 : vector<1x1x64xf32> to vector<1x64xf32>
    %c26 = arith.constant 26 : index
    %c0_153 = arith.constant 0 : index
    %c0_154 = arith.constant 0 : index
    %271 = vector.load %arg9[%c26, %c0_153, %c0_154] : memref<28x1x64xf32, #tpu.memory_space<vmem>>, vector<1x1x64xf32>
    %272 = vector.shape_cast %271 : vector<1x1x64xf32> to vector<1x64xf32>
    %c27 = arith.constant 27 : index
    %c0_155 = arith.constant 0 : index
    %c0_156 = arith.constant 0 : index
    %273 = vector.load %arg9[%c27, %c0_155, %c0_156] : memref<28x1x64xf32, #tpu.memory_space<vmem>>, vector<1x1x64xf32>
    %274 = vector.shape_cast %273 : vector<1x1x64xf32> to vector<1x64xf32>
    %275 = arith.truncf %254 : vector<1x64xf32> to vector<1x64xbf16>
    %cst_157 = arith.constant dense<0.000000e+00> : vector<1x64xf32>
    %276 = tpu.matmul %275, %256, %cst_157 {dimension_numbers = #tpu.dot_dimension_numbers<[1], [0], [0], [1], [0, 0, 1, 1], [], []>} : vector<1x64xbf16>, vector<64x64xbf16>, vector<1x64xf32> -> vector<1x64xf32>
    %277 = arith.addf %276, %262 : vector<1x64xf32>
    %278 = arith.addf %254, %277 : vector<1x64xf32>
    %cst_158 = arith.constant dense<0.000000e+00> : vector<1xf32>
    %279 = vector.multi_reduction <add>, %278, %cst_158 [1] : vector<1x64xf32> to vector<1xf32>
    %280 = vector.shape_cast %279 : vector<1xf32> to vector<1x1xf32>
    %cst_159 = arith.constant 6.400000e+01 : f32
    %281 = vector.broadcast %cst_159 : f32 to vector<1x1xf32>
    %282 = arith.divf %280, %281 : vector<1x1xf32>
    %283 = vector.broadcast %282 : vector<1x1xf32> to vector<1x64xf32>
    %284 = arith.subf %278, %283 : vector<1x64xf32>
    %285 = arith.mulf %284, %284 : vector<1x64xf32>
    %cst_160 = arith.constant dense<0.000000e+00> : vector<1xf32>
    %286 = vector.multi_reduction <add>, %285, %cst_160 [1] : vector<1x64xf32> to vector<1xf32>
    %287 = vector.shape_cast %286 : vector<1xf32> to vector<1x1xf32>
    %cst_161 = arith.constant 6.400000e+01 : f32
    %288 = vector.broadcast %cst_161 : f32 to vector<1x1xf32>
    %289 = arith.divf %287, %288 : vector<1x1xf32>
    %290 = vector.broadcast %282 : vector<1x1xf32> to vector<1x64xf32>
    %291 = arith.subf %278, %290 : vector<1x64xf32>
    %cst_162 = arith.constant 9.99999974E-6 : f32
    %292 = vector.broadcast %cst_162 : f32 to vector<1x1xf32>
    %293 = arith.addf %289, %292 : vector<1x1xf32>
    %294 = math.rsqrt %293 : vector<1x1xf32>
    %295 = vector.broadcast %294 : vector<1x1xf32> to vector<1x64xf32>
    %296 = arith.mulf %291, %295 : vector<1x64xf32>
    %297 = arith.mulf %296, %264 : vector<1x64xf32>
    %298 = arith.addf %297, %266 : vector<1x64xf32>
    %299 = arith.truncf %298 : vector<1x64xf32> to vector<1x64xbf16>
    %cst_163 = arith.constant dense<0.000000e+00> : vector<1x64xf32>
    %300 = tpu.matmul %299, %258, %cst_163 {dimension_numbers = #tpu.dot_dimension_numbers<[1], [0], [0], [1], [0, 0, 1, 1], [], []>} : vector<1x64xbf16>, vector<64x64xbf16>, vector<1x64xf32> -> vector<1x64xf32>
    %301 = arith.addf %300, %268 : vector<1x64xf32>
    %cst_164 = arith.constant 0.000000e+00 : f32
    %302 = vector.broadcast %cst_164 : f32 to vector<1x64xf32>
    %303 = arith.maximumf %301, %302 : vector<1x64xf32>
    %304 = arith.truncf %303 : vector<1x64xf32> to vector<1x64xbf16>
    %cst_165 = arith.constant dense<0.000000e+00> : vector<1x64xf32>
    %305 = tpu.matmul %304, %260, %cst_165 {dimension_numbers = #tpu.dot_dimension_numbers<[1], [0], [0], [1], [0, 0, 1, 1], [], []>} : vector<1x64xbf16>, vector<64x64xbf16>, vector<1x64xf32> -> vector<1x64xf32>
    %306 = arith.addf %305, %270 : vector<1x64xf32>
    %307 = arith.addf %298, %306 : vector<1x64xf32>
    %cst_166 = arith.constant dense<0.000000e+00> : vector<1xf32>
    %308 = vector.multi_reduction <add>, %307, %cst_166 [1] : vector<1x64xf32> to vector<1xf32>
    %309 = vector.shape_cast %308 : vector<1xf32> to vector<1x1xf32>
    %cst_167 = arith.constant 6.400000e+01 : f32
    %310 = vector.broadcast %cst_167 : f32 to vector<1x1xf32>
    %311 = arith.divf %309, %310 : vector<1x1xf32>
    %312 = vector.broadcast %311 : vector<1x1xf32> to vector<1x64xf32>
    %313 = arith.subf %307, %312 : vector<1x64xf32>
    %314 = arith.mulf %313, %313 : vector<1x64xf32>
    %cst_168 = arith.constant dense<0.000000e+00> : vector<1xf32>
    %315 = vector.multi_reduction <add>, %314, %cst_168 [1] : vector<1x64xf32> to vector<1xf32>
    %316 = vector.shape_cast %315 : vector<1xf32> to vector<1x1xf32>
    %cst_169 = arith.constant 6.400000e+01 : f32
    %317 = vector.broadcast %cst_169 : f32 to vector<1x1xf32>
    %318 = arith.divf %316, %317 : vector<1x1xf32>
    %319 = vector.broadcast %311 : vector<1x1xf32> to vector<1x64xf32>
    %320 = arith.subf %307, %319 : vector<1x64xf32>
    %cst_170 = arith.constant 9.99999974E-6 : f32
    %321 = vector.broadcast %cst_170 : f32 to vector<1x1xf32>
    %322 = arith.addf %318, %321 : vector<1x1xf32>
    %323 = math.rsqrt %322 : vector<1x1xf32>
    %324 = vector.broadcast %323 : vector<1x1xf32> to vector<1x64xf32>
    %325 = arith.mulf %320, %324 : vector<1x64xf32>
    %326 = arith.mulf %325, %272 : vector<1x64xf32>
    %327 = arith.addf %326, %274 : vector<1x64xf32>
    %c0_171 = arith.constant 0 : index
    %c0_172 = arith.constant 0 : index
    %328 = vector.load %arg10[%c0_171, %c0_172] : memref<64x2xf32, #tpu.memory_space<vmem>>, vector<64x2xf32>
    %cst_173 = arith.constant dense<0.000000e+00> : vector<1x2xf32>
    %329 = tpu.matmul %327, %328, %cst_173 {dimension_numbers = #tpu.dot_dimension_numbers<[1], [0], [0], [1], [0, 0, 1, 1], [], []>} : vector<1x64xf32>, vector<64x2xf32>, vector<1x2xf32> -> vector<1x2xf32>
    %c0_174 = arith.constant 0 : index
    %c0_175 = arith.constant 0 : index
    %330 = vector.load %arg11[%c0_174, %c0_175] : memref<1x2xf32, #tpu.memory_space<vmem>>, vector<1x2xf32>
    %331 = arith.addf %329, %330 : vector<1x2xf32>
    %c0_176 = arith.constant 0 : index
    %c0_177 = arith.constant 0 : index
    %332 = vector.load %arg12[%c0_176, %c0_177] : memref<1x2xf32, #tpu.memory_space<vmem>>, vector<1x2xf32>
    tpu.vector_store %arg12[%c0_176, %c0_177], %331 {strides = array<i32>} : memref<1x2xf32, #tpu.memory_space<vmem>>, vector<1x2xf32>,
    return
  }
}

</mosaic_0001>

<llo_original>
// kernel: cet_s_forward.1
$region0: #{cet_s_forward.1}
  #allocation0 [shape = 'u32[]', space=smem, size = 0x4, offset = 0x4, fixed_abs, tag = 'smem constant byte address 0x4 - core index']
  #allocation1 [shape = 'u32[144,128]{1,0:T(1,128)}', space=vmem, size = 0x12000, scoped, tag = 'internal scratch']
  #allocation2 [shape = 'f32[1,1]{1,0:T(1,128)S(1)}', space=vmem, size = 0x200, scoped, tag = 'scoped memory for cet_s_forward.1']
  %s0 = inlined_call_operand.vmem [shape: bf16[128,384], index: 0, kind: input, shape index: {}]
  %s1 = inlined_call_operand.vmem [shape: f32[24,320], index: 1, kind: input, shape index: {}]
  %s2 = inlined_call_operand.vmem [shape: bf16[24,128], index: 2, kind: input, shape index: {}]
  %s3 = inlined_call_operand.vmem [shape: f32[8,24], index: 3, kind: input, shape index: {}]
  %s4 = inlined_call_operand.vmem [shape: f32[1,24], index: 4, kind: input, shape index: {}]
  %s5 = inlined_call_operand.<no memory space> [shape: f32[1,1], index: 5, kind: input, shape index: {}]
  %s6 = inlined_call_operand.vmem [shape: bf16[320,64], index: 6, kind: input, shape index: {}]
  %s7 = inlined_call_operand.vmem [shape: f32[1,64], index: 7, kind: input, shape index: {}]
  %s8 = inlined_call_operand.vmem [shape: bf16[12,64,64], index: 8, kind: input, shape index: {}]
  %s9 = inlined_call_operand.vmem [shape: f32[28,1,64], index: 9, kind: input, shape index: {}]
  %s10 = inlined_call_operand.vmem [shape: f32[64,2], index: 10, kind: input, shape index: {}]
  %s11 = inlined_call_operand.vmem [shape: f32[1,2], index: 11, kind: input, shape index: {}]
  %s12 = inlined_call_operand.hbm [shape: f32[1,2], index: 12, kind: output, shape index: {}]
  %s13 = sld [smem:[#allocation0]]
  $region58: #{cet_s_forward.1} parent=0
    _
  %s15 = ssub.s32 1, %s13
  %s16 = scalar_select 0, %s15, %s13
  %v17 = vstv %s5
  %18 = vst [vmem:[#allocation2] sm:$0x1] %v17
  $region1: #{cet_s_forward.1} parent=0
    #allocation3 [shape = 'u8[512]{0}', space=vmem, size = 0x400, scoped, tag = 'output window, operand 0, single buffered']
    #allocation4 [shape = 's32[1]{0}', space=sflag, size = 0x4, scoped, tag = 'scoped memory for cet_s_forward.1']
    %19 = vsyncpa [#allocation4], 0
    // Predicated region
    $region2: #{cet_s_forward.1} parent=1 // pred_check
      _
    $region3: #{cet_s_forward.1} parent=1 // pred_check_branch
      %21 = sbr.rel (0) target = $region5
    $region4: #{cet_s_forward.1} parent=1 // pred_region
      _
    $region5: #{cet_s_forward.1} parent=1 // pred_fallthru
      _
    // Predicated region
    $region6: #{cet_s_forward.1} parent=1 // pred_check
      _
    $region7: #{cet_s_forward.1} parent=1 // pred_check_branch
      %23 = sbr.rel (0) target = $region9
    $region8: #{cet_s_forward.1} parent=1 // pred_region
      _
    $region9: #{cet_s_forward.1} parent=1 // pred_fallthru
      _
    // Predicated region
    $region10: #{cet_s_forward.1} parent=1 // pred_check
      _
    $region11: #{cet_s_forward.1} parent=1 // pred_check_branch
      %25 = sbr.rel (0) target = $region13
    $region12: #{cet_s_forward.1} parent=1 // pred_region
      _
    $region13: #{cet_s_forward.1} parent=1 // pred_fallthru
      _
    // Predicated region
    $region14: #{cet_s_forward.1} parent=1 // pred_check
      _
    $region15: #{cet_s_forward.1} parent=1 // pred_check_branch
      %27 = sbr.rel (0) target = $region17
    $region16: #{cet_s_forward.1} parent=1 // pred_region
      _
    $region17: #{cet_s_forward.1} parent=1 // pred_fallthru
      _
    // Predicated region
    $region18: #{cet_s_forward.1} parent=1 // pred_check
      _
    $region19: #{cet_s_forward.1} parent=1 // pred_check_branch
      %29 = sbr.rel (0) target = $region21
    $region20: #{cet_s_forward.1} parent=1 // pred_region
      _
    $region21: #{cet_s_forward.1} parent=1 // pred_fallthru
      _
    // Predicated region
    $region22: #{cet_s_forward.1} parent=1 // pred_check
      _
    $region23: #{cet_s_forward.1} parent=1 // pred_check_branch
      %31 = sbr.rel (0) target = $region25
    $region24: #{cet_s_forward.1} parent=1 // pred_region
      _
    $region25: #{cet_s_forward.1} parent=1 // pred_fallthru
      _
    // Predicated region
    $region26: #{cet_s_forward.1} parent=1 // pred_check
      _
    $region27: #{cet_s_forward.1} parent=1 // pred_check_branch
      %33 = sbr.rel (0) target = $region29
    $region28: #{cet_s_forward.1} parent=1 // pred_region
      _
    $region29: #{cet_s_forward.1} parent=1 // pred_fallthru
      _
    // Predicated region
    $region30: #{cet_s_forward.1} parent=1 // pred_check
      _
    $region31: #{cet_s_forward.1} parent=1 // pred_check_branch
      %35 = sbr.rel (0) target = $region33
    $region32: #{cet_s_forward.1} parent=1 // pred_region
      _
    $region33: #{cet_s_forward.1} parent=1 // pred_fallthru
      _
    // Predicated region
    $region34: #{cet_s_forward.1} parent=1 // pred_check
      _
    $region35: #{cet_s_forward.1} parent=1 // pred_check_branch
      %37 = sbr.rel (0) target = $region37
    $region36: #{cet_s_forward.1} parent=1 // pred_region
      _
    $region37: #{cet_s_forward.1} parent=1 // pred_fallthru
      _
    // Predicated region
    $region38: #{cet_s_forward.1} parent=1 // pred_check
      _
    $region39: #{cet_s_forward.1} parent=1 // pred_check_branch
      %39 = sbr.rel (0) target = $region41
    $region40: #{cet_s_forward.1} parent=1 // pred_region
      _
    $region41: #{cet_s_forward.1} parent=1 // pred_fallthru
      _
    // Predicated region
    $region42: #{cet_s_forward.1} parent=1 // pred_check
      _
    $region43: #{cet_s_forward.1} parent=1 // pred_check_branch
      %41 = sbr.rel (0) target = $region45
    $region44: #{cet_s_forward.1} parent=1 // pred_region
      _
    $region45: #{cet_s_forward.1} parent=1 // pred_fallthru
      _
    // Predicated region
    $region46: #{cet_s_forward.1} parent=1 // pred_check
      _
    $region47: #{cet_s_forward.1} parent=1 // pred_check_branch
      %43 = sbr.rel (0) target = $region49
    $region48: #{cet_s_forward.1} parent=1 // pred_region
      _
    $region49: #{cet_s_forward.1} parent=1 // pred_fallthru
      _
    %v45 = vld [vmem:[%s2] sm:$0xf]
    %v46 = vld [vmem:[%s2 + $0x4] sm:$0xf]
    %v47 = vld [vmem:[%s2 + $0x8] sm:$0xf]
    %v48 = vld [vmem:[%s0] sm:$0xff]
    %v49 = vld [vmem:[%s0 + $0x8] sm:$0xf]
    %v50 = vld [vmem:[%s0 + $0xc] sm:$0xff]
    %v51 = vld [vmem:[%s0 + $0x14] sm:$0xf]
    %v52 = vld [vmem:[%s0 + $0x18] sm:$0xff]
    %v53 = vld [vmem:[%s0 + $0x20] sm:$0xf]
    %v54 = vld [vmem:[%s0 + $0x24] sm:$0xff]
    %v55 = vld [vmem:[%s0 + $0x2c] sm:$0xf]
    %v56 = vld [vmem:[%s0 + $0x30] sm:$0xff]
    %v57 = vld [vmem:[%s0 + $0x38] sm:$0xf]
    %v58 = vld [vmem:[%s0 + $0x3c] sm:$0xff]
    %v59 = vld [vmem:[%s0 + $0x44] sm:$0xf]
    %v60 = vld [vmem:[%s0 + $0x48] sm:$0xff]
    %v61 = vld [vmem:[%s0 + $0x50] sm:$0xf]
    %v62 = vld [vmem:[%s0 + $0x54] sm:$0xff]
    %v63 = vld [vmem:[%s0 + $0x5c] sm:$0xf]
    %v64 = vld [vmem:[%s0 + $0x60] sm:$0xff]
    %v65 = vld [vmem:[%s0 + $0x68] sm:$0xf]
    %v66 = vld [vmem:[%s0 + $0x6c] sm:$0xff]
    %v67 = vld [vmem:[%s0 + $0x74] sm:$0xf]
    %v68 = vld [vmem:[%s0 + $0x78] sm:$0xff]
    %v69 = vld [vmem:[%s0 + $0x80] sm:$0xf]
    %v70 = vld [vmem:[%s0 + $0x84] sm:$0xff]
    %v71 = vld [vmem:[%s0 + $0x8c] sm:$0xf]
    %v72 = vld [vmem:[%s0 + $0x90] sm:$0xff]
    %v73 = vld [vmem:[%s0 + $0x98] sm:$0xf]
    %v74 = vld [vmem:[%s0 + $0x9c] sm:$0xff]
    %v75 = vld [vmem:[%s0 + $0xa4] sm:$0xf]
    %v76 = vld [vmem:[%s0 + $0xa8] sm:$0xff]
    %v77 = vld [vmem:[%s0 + $0xb0] sm:$0xf]
    %v78 = vld [vmem:[%s0 + $0xb4] sm:$0xff]
    %v79 = vld [vmem:[%s0 + $0xbc] sm:$0xf]
    %v83 = vunpack.c.l.b16 %v45
    %v84 = vunpack.c.l.b16 %v46
    %v85 = vunpack.c.l.b16 %v47
    %v86 = vpack.c.b16 %v84, %v83
    %v87 = vpack.c.b16 %v85, %v85
    %v122 = vunpack.c.l.b16 %v48
    %v123 = vunpack.c.h.b16 %v48
    %v124 = vunpack.c.l.b16 %v49
    %v125 = vunpack.c.l.b16 %v50
    %v126 = vunpack.c.h.b16 %v50
    %v127 = vunpack.c.l.b16 %v51
    %v128 = vunpack.c.l.b16 %v52
    %v129 = vunpack.c.h.b16 %v52
    %v130 = vunpack.c.l.b16 %v53
    %v131 = vunpack.c.l.b16 %v54
    %v132 = vunpack.c.h.b16 %v54
    %v133 = vunpack.c.l.b16 %v55
    %v134 = vunpack.c.l.b16 %v56
    %v135 = vunpack.c.h.b16 %v56
    %v136 = vunpack.c.l.b16 %v57
    %v137 = vunpack.c.l.b16 %v58
    %v138 = vunpack.c.h.b16 %v58
    %v139 = vunpack.c.l.b16 %v59
    %v140 = vunpack.c.l.b16 %v60
    %v141 = vunpack.c.h.b16 %v60
    %v142 = vunpack.c.l.b16 %v61
    %v143 = vunpack.c.l.b16 %v62
    %v144 = vunpack.c.h.b16 %v62
    %v145 = vunpack.c.l.b16 %v63
    %v146 = vunpack.c.l.b16 %v64
    %v147 = vunpack.c.h.b16 %v64
    %v148 = vunpack.c.l.b16 %v65
    %v149 = vunpack.c.l.b16 %v66
    %v150 = vunpack.c.h.b16 %v66
    %v151 = vunpack.c.l.b16 %v67
    %v152 = vunpack.c.l.b16 %v68
    %v153 = vunpack.c.h.b16 %v68
    %v154 = vunpack.c.l.b16 %v69
    %v155 = vunpack.c.l.b16 %v70
    %v156 = vunpack.c.h.b16 %v70
    %v157 = vunpack.c.l.b16 %v71
    %v158 = vunpack.c.l.b16 %v72
    %v159 = vunpack.c.h.b16 %v72
    %v160 = vunpack.c.l.b16 %v73
    %v161 = vunpack.c.l.b16 %v74
    %v162 = vunpack.c.h.b16 %v74
    %v163 = vunpack.c.l.b16 %v75
    %v164 = vunpack.c.l.b16 %v76
    %v165 = vunpack.c.h.b16 %v76
    %v166 = vunpack.c.l.b16 %v77
    %v167 = vunpack.c.l.b16 %v78
    %v168 = vunpack.c.h.b16 %v78
    %v169 = vunpack.c.l.b16 %v79
    %v170 = vpack.c.b16 %v125, %v122
    %v171 = vpack.c.b16 %v126, %v123
    %v172 = vpack.c.b16 %v127, %v124
    %v173 = vpack.c.b16 %v131, %v128
    %v174 = vpack.c.b16 %v132, %v129
    %v175 = vpack.c.b16 %v133, %v130
    %v176 = vpack.c.b16 %v137, %v134
    %v177 = vpack.c.b16 %v138, %v135
    %v178 = vpack.c.b16 %v139, %v136
    %v179 = vpack.c.b16 %v143, %v140
    %v180 = vpack.c.b16 %v144, %v141
    %v181 = vpack.c.b16 %v145, %v142
    %v182 = vpack.c.b16 %v149, %v146
    %v183 = vpack.c.b16 %v150, %v147
    %v184 = vpack.c.b16 %v151, %v148
    %v185 = vpack.c.b16 %v155, %v152
    %v186 = vpack.c.b16 %v156, %v153
    %v187 = vpack.c.b16 %v157, %v154
    %v188 = vpack.c.b16 %v161, %v158
    %v189 = vpack.c.b16 %v162, %v159
    %v190 = vpack.c.b16 %v163, %v160
    %v191 = vpack.c.b16 %v167, %v164
    %v192 = vpack.c.b16 %v168, %v165
    %v193 = vpack.c.b16 %v169, %v166
    %218 = vmatprep.subr.bf16.mxu0 %v171
    %219 = vmatpush1.bf16.msra.mxu0 %v170
    %220 = vmatprep.subr.bf16.mxu0 %v174
    %221 = vmatpush1.bf16.msra.mxu0 %v173
    %222 = vmatprep.subr.bf16.mxu0 %v177
    %223 = vmatpush1.bf16.msra.mxu0 %v176
    %224 = vmatprep.subr.bf16.mxu0 %v180
    %225 = vmatpush1.bf16.msra.mxu0 %v179
    %226 = vmatprep.subr.bf16.mxu0 %v183
    %227 = vmatpush1.bf16.msra.mxu0 %v182
    %228 = vmatprep.subr.bf16.mxu0 %v186
    %229 = vmatpush1.bf16.msra.mxu0 %v185
    %230 = vmatprep.subr.bf16.mxu0 %v189
    %231 = vmatpush1.bf16.msra.mxu0 %v188
    %232 = vmatprep.subr.bf16.mxu0 %v192
    %233 = vmatpush1.bf16.msra.mxu0 %v191
    %234 = vmatprep.subr.bf16.mxu0 0
    %235 = vmatpush1.bf16.msra.mxu0 0
    %236 = vmatprep.subr.bf16.mxu0 0
    %237 = vmatpush1.bf16.msra.mxu0 0
    %238 = vmatprep.subr.bf16.mxu0 0
    %239 = vmatpush1.bf16.msra.mxu0 0
    %240 = vmatprep.subr.bf16.mxu0 0
    %241 = vmatpush1.bf16.msra.mxu0 0
    %242 = vmatprep.subr.bf16.mxu0 0
    %243 = vmatpush1.bf16.msra.mxu0 0
    %244 = vmatprep.subr.bf16.mxu0 0
    %245 = vmatpush1.bf16.msra.mxu0 0
    %246 = vmatprep.subr.bf16.mxu0 0
    %247 = vmatpush1.bf16.msra.mxu0 0
    %248 = vmatprep.subr.bf16.mxu0 0
    %249 = vmatpush1.bf16.msra.mxu0 0
    %250 = vmatprep.mubr.bf16.mxu0 0
    %251 = vmatmul.mubr.bf16.gmra.mrb[0].mxu0 %v86
    %v252 = vpop.f32.mrb[0].mxu0
    %v253 = vadd.f32 0.0, %v252
    %v254 = vpop.f32.mrb[0].mxu0
    %v255 = vadd.f32 0.0, %v254
    %v256 = vpop.f32.mrb[0].mxu0
    %v257 = vadd.f32 0.0, %v256
    %v258 = vpop.f32.mrb[0].mxu0
    %v259 = vadd.f32 0.0, %v258
    %260 = vmatprep.mubr.bf16.mxu0 0
    %261 = vmatmul.mubr.bf16.gmra.mrb[0].mxu0 %v87
    %v262 = vpop.f32.mrb[0].mxu0
    %v263 = vadd.f32 0.0, %v262
    %v264 = vpop.f32.mrb[0].mxu0
    %v265 = vadd.f32 0.0, %v264
    %v266 = vpop.f32.mrb[0].mxu0
    %v267 = vpop.f32.mrb[0].mxu0
    %268 = vdwg.mxu0
    %269 = vmatprep.subr.bf16.mxu0 0
    %270 = vmatpush1.bf16.msra.mxu0 %v172
    %271 = vmatprep.subr.bf16.mxu0 0
    %272 = vmatpush1.bf16.msra.mxu0 %v175
    %273 = vmatprep.subr.bf16.mxu0 0
    %274 = vmatpush1.bf16.msra.mxu0 %v178
    %275 = vmatprep.subr.bf16.mxu0 0
    %276 = vmatpush1.bf16.msra.mxu0 %v181
    %277 = vmatprep.subr.bf16.mxu0 0
    %278 = vmatpush1.bf16.msra.mxu0 %v184
    %279 = vmatprep.subr.bf16.mxu0 0
    %280 = vmatpush1.bf16.msra.mxu0 %v187
    %281 = vmatprep.subr.bf16.mxu0 0
    %282 = vmatpush1.bf16.msra.mxu0 %v190
    %283 = vmatprep.subr.bf16.mxu0 0
    %284 = vmatpush1.bf16.msra.mxu0 %v193
    %285 = vmatprep.subr.bf16.mxu0 0
    %286 = vmatpush1.bf16.msra.mxu0 0
    %287 = vmatprep.subr.bf16.mxu0 0
    %288 = vmatpush1.bf16.msra.mxu0 0
    %289 = vmatprep.subr.bf16.mxu0 0
    %290 = vmatpush1.bf16.msra.mxu0 0
    %291 = vmatprep.subr.bf16.mxu0 0
    %292 = vmatpush1.bf16.msra.mxu0 0
    %293 = vmatprep.subr.bf16.mxu0 0
    %294 = vmatpush1.bf16.msra.mxu0 0
    %295 = vmatprep.subr.bf16.mxu0 0
    %296 = vmatpush1.bf16.msra.mxu0 0
    %297 = vmatprep.subr.bf16.mxu0 0
    %298 = vmatpush1.bf16.msra.mxu0 0
    %299 = vmatprep.subr.bf16.mxu0 0
    %300 = vmatpush1.bf16.msra.mxu0 0
    %301 = vmatprep.mubr.bf16.mxu0 0
    %302 = vmatmul.mubr.bf16.gmra.mrb[0].mxu0 %v86
    %v303 = vpop.f32.mrb[0].mxu0
    %v304 = vadd.f32 0.0, %v303
    %v305 = vpop.f32.mrb[0].mxu0
    %v306 = vpop.f32.mrb[0].mxu0
    %v307 = vadd.f32 0.0, %v306
    %v308 = vpop.f32.mrb[0].mxu0
    %309 = vmatprep.mubr.bf16.mxu0 0
    %310 = vmatmul.mubr.bf16.gmra.mrb[0].mxu0 %v87
    %v311 = vpop.f32.mrb[0].mxu0
    %v312 = vadd.f32 0.0, %v311
    %v313 = vpop.f32.mrb[0].mxu0
    %v314 = vpop.f32.mrb[0].mxu0
    %v315 = vpop.f32.mrb[0].mxu0
    %316 = vdwg.mxu0
    %vm317 = vcmp.ge.f32.partialorder %v253, 0.0
    %vm318 = vcmp.ge.f32.partialorder %v255, 0.0
    %vm319 = vcmp.ge.f32.partialorder %v304, 0.0
    %vm320 = vcmp.ge.f32.partialorder %v257, 0.0
    %vm321 = vcmp.ge.f32.partialorder %v259, 0.0
    %vm322 = vcmp.ge.f32.partialorder %v307, 0.0
    %vm323 = vcmp.ge.f32.partialorder %v263, 0.0
    %vm324 = vcmp.ge.f32.partialorder %v265, 0.0
    %vm325 = vcmp.ge.f32.partialorder %v312, 0.0
    %v326 = vmul.f32 %v253, 0.01
    %v327 = vmul.f32 %v255, 0.01
    %v328 = vmul.f32 %v304, 0.01
    %v329 = vmul.f32 %v257, 0.01
    %v330 = vmul.f32 %v259, 0.01
    %v331 = vmul.f32 %v307, 0.01
    %v332 = vmul.f32 %v263, 0.01
    %v333 = vmul.f32 %v265, 0.01
    %v334 = vmul.f32 %v312, 0.01
    %v335 = vsel %vm317, %v253, %v326
    %v336 = vsel %vm318, %v255, %v327
    %v337 = vsel %vm319, %v304, %v328
    %v338 = vsel %vm320, %v257, %v329
    %v339 = vsel %vm321, %v259, %v330
    %v340 = vsel %vm322, %v307, %v331
    %v341 = vsel %vm323, %v263, %v332
    %v342 = vsel %vm324, %v265, %v333
    %v343 = vsel %vm325, %v312, %v334
    %v344 = vld [vmem:[%s3] sm:$0xff]
    %vm345 = vcmask 195584
    %v347 = vsel %vm345, %v344, 0
    %349 = vmatprep.subr.mxu0 %v336
    %350 = vmatpush1.msra.mxu0 %v335
    %351 = vmatprep.subr.mxu0 %v339
    %352 = vmatpush1.msra.mxu0 %v338
    %353 = vmatprep.subr.mxu0 %v342
    %354 = vmatpush1.msra.mxu0 %v341
    %355 = vmatprep.subr.mxu0 0.0
    %356 = vmatpush1.msra.mxu0 0.0
    %357 = vmatprep.subr.mxu0 0.0
    %358 = vmatpush1.msra.mxu0 0.0
    %359 = vmatprep.subr.mxu0 0.0
    %360 = vmatpush1.msra.mxu0 0.0
    %361 = vmatprep.subr.mxu0 0.0
    %362 = vmatpush1.msra.mxu0 0.0
    %363 = vmatprep.subr.mxu0 0.0
    %364 = vmatpush1.msra.mxu0 0.0
    %365 = vmatprep.subr.mxu0 0.0
    %366 = vmatpush1.msra.mxu0 0.0
    %367 = vmatprep.subr.mxu0 0.0
    %368 = vmatpush1.msra.mxu0 0.0
    %369 = vmatprep.subr.mxu0 0.0
    %370 = vmatpush1.msra.mxu0 0.0
    %371 = vmatprep.subr.mxu0 0.0
    %372 = vmatpush1.msra.mxu0 0.0
    %373 = vmatprep.subr.mxu0 0.0
    %374 = vmatpush1.msra.mxu0 0.0
    %375 = vmatprep.subr.mxu0 0.0
    %376 = vmatpush1.msra.mxu0 0.0
    %377 = vmatprep.subr.mxu0 0.0
    %378 = vmatpush1.msra.mxu0 0.0
    %379 = vmatprep.subr.mxu0 0.0
    %380 = vmatpush1.msra.mxu0 0.0
    %381 = vmatprep.subr.mxu0 0.0
    %382 = vmatpush1.msra.mxu0 0.0
    %383 = vmatprep.subr.mxu0 0.0
    %384 = vmatpush1.msra.mxu0 0.0
    %385 = vmatprep.subr.mxu0 0.0
    %386 = vmatpush1.msra.mxu0 0.0
    %387 = vmatprep.subr.mxu0 0.0
    %388 = vmatpush1.msra.mxu0 0.0
    %389 = vmatprep.subr.mxu0 0.0
    %390 = vmatpush1.msra.mxu0 0.0
    %391 = vmatprep.subr.mxu0 0.0
    %392 = vmatpush1.msra.mxu0 0.0
    %393 = vmatprep.subr.mxu0 0.0
    %394 = vmatpush1.msra.mxu0 0.0
    %395 = vmatprep.subr.mxu0 0.0
    %396 = vmatpush1.msra.mxu0 0.0
    %397 = vmatprep.subr.mxu0 0.0
    %398 = vmatpush1.msra.mxu0 0.0
    %399 = vmatprep.subr.mxu0 0.0
    %400 = vmatpush1.msra.mxu0 0.0
    %401 = vmatprep.subr.mxu0 0.0
    %402 = vmatpush1.msra.mxu0 0.0
    %403 = vmatprep.subr.mxu0 0.0
    %404 = vmatpush1.msra.mxu0 0.0
    %405 = vmatprep.subr.mxu0 0.0
    %406 = vmatpush1.msra.mxu0 0.0
    %407 = vmatprep.subr.mxu0 0.0
    %408 = vmatpush1.msra.mxu0 0.0
    %409 = vmatprep.subr.mxu0 0.0
    %410 = vmatpush1.msra.mxu0 0.0
    %411 = vmatprep.subr.mxu0 0.0
    %412 = vmatpush1.msra.mxu0 0.0
    %413 = vmatprep.mubr.f32.mxu0 0.0
    %414 = vmatmul.mubr.f32.gmra.mrb[0].mxu0 %v347
    %v415 = vpop.f32.mrb[0].mxu0
    %v416 = vadd.f32 0.0, %v415
    %v417 = vpop.f32.mrb[0].mxu0
    %v418 = vadd.f32 0.0, %v417
    %419 = vdwg.mxu0
    %420 = vmatprep.subr.mxu0 0.0
    %421 = vmatpush1.msra.mxu0 %v337
    %422 = vmatprep.subr.mxu0 0.0
    %423 = vmatpush1.msra.mxu0 %v340
    %424 = vmatprep.subr.mxu0 0.0
    %425 = vmatpush1.msra.mxu0 %v343
    %426 = vmatprep.subr.mxu0 0.0
    %427 = vmatpush1.msra.mxu0 0.0
    %428 = vmatprep.subr.mxu0 0.0
    %429 = vmatpush1.msra.mxu0 0.0
    %430 = vmatprep.subr.mxu0 0.0
    %431 = vmatpush1.msra.mxu0 0.0
    %432 = vmatprep.subr.mxu0 0.0
    %433 = vmatpush1.msra.mxu0 0.0
    %434 = vmatprep.subr.mxu0 0.0
    %435 = vmatpush1.msra.mxu0 0.0
    %436 = vmatprep.subr.mxu0 0.0
    %437 = vmatpush1.msra.mxu0 0.0
    %438 = vmatprep.subr.mxu0 0.0
    %439 = vmatpush1.msra.mxu0 0.0
    %440 = vmatprep.subr.mxu0 0.0
    %441 = vmatpush1.msra.mxu0 0.0
    %442 = vmatprep.subr.mxu0 0.0
    %443 = vmatpush1.msra.mxu0 0.0
    %444 = vmatprep.subr.mxu0 0.0
    %445 = vmatpush1.msra.mxu0 0.0
    %446 = vmatprep.subr.mxu0 0.0
    %447 = vmatpush1.msra.mxu0 0.0
    %448 = vmatprep.subr.mxu0 0.0
    %449 = vmatpush1.msra.mxu0 0.0
    %450 = vmatprep.subr.mxu0 0.0
    %451 = vmatpush1.msra.mxu0 0.0
    %452 = vmatprep.subr.mxu0 0.0
    %453 = vmatpush1.msra.mxu0 0.0
    %454 = vmatprep.subr.mxu0 0.0
    %455 = vmatpush1.msra.mxu0 0.0
    %456 = vmatprep.subr.mxu0 0.0
    %457 = vmatpush1.msra.mxu0 0.0
    %458 = vmatprep.subr.mxu0 0.0
    %459 = vmatpush1.msra.mxu0 0.0
    %460 = vmatprep.subr.mxu0 0.0
    %461 = vmatpush1.msra.mxu0 0.0
    %462 = vmatprep.subr.mxu0 0.0
    %463 = vmatpush1.msra.mxu0 0.0
    %464 = vmatprep.subr.mxu0 0.0
    %465 = vmatpush1.msra.mxu0 0.0
    %466 = vmatprep.subr.mxu0 0.0
    %467 = vmatpush1.msra.mxu0 0.0
    %468 = vmatprep.subr.mxu0 0.0
    %469 = vmatpush1.msra.mxu0 0.0
    %470 = vmatprep.subr.mxu0 0.0
    %471 = vmatpush1.msra.mxu0 0.0
    %472 = vmatprep.subr.mxu0 0.0
    %473 = vmatpush1.msra.mxu0 0.0
    %474 = vmatprep.subr.mxu0 0.0
    %475 = vmatpush1.msra.mxu0 0.0
    %476 = vmatprep.subr.mxu0 0.0
    %477 = vmatpush1.msra.mxu0 0.0
    %478 = vmatprep.subr.mxu0 0.0
    %479 = vmatpush1.msra.mxu0 0.0
    %480 = vmatprep.subr.mxu0 0.0
    %481 = vmatpush1.msra.mxu0 0.0
    %482 = vmatprep.subr.mxu0 0.0
    %483 = vmatpush1.msra.mxu0 0.0
    %484 = vmatprep.mubr.f32.mxu0 0.0
    %485 = vmatmul.mubr.f32.gmra.mrb[0].mxu0 %v347
    %v486 = vpop.f32.mrb[0].mxu0
    %v487 = vadd.f32 0.0, %v486
    %v488 = vpop.f32.mrb[0].mxu0
    %489 = vdwg.mxu0
    %v490 = vld [vmem:[%s4] sm:$0x1]
    %v491 = vld [vmem:[%s1] sm:$0xff]
    %v492 = vld [vmem:[%s1 + $0x8] sm:$0xff]
    %v493 = vld [vmem:[%s1 + $0x10] sm:$0xff]
    %v494 = vld [vmem:[%s1 + $0x18] sm:$0xff]
    %v495 = vld [vmem:[%s1 + $0x20] sm:$0xff]
    %v496 = vld [vmem:[%s1 + $0x28] sm:$0xff]
    %v497 = vld [vmem:[%s1 + $0x30] sm:$0xff]
    %v498 = vld [vmem:[%s1 + $0x38] sm:$0xff]
    %v499 = vld [vmem:[%s1 + $0x40] sm:$0xff]
    %v500 = vld [vmem:[#allocation2] sm:$0x1]
    %502 = vset.pattern.permute.xlu0 0
    %503 = vperm.xlu0 %502, %v500
    %v504 = vpop.permute.xlu0 %503
    %v506 = vlaneseq
    %v507 = vshrl.u32 %v506, 7
    %v508 = vsub.s32 0, %v507
    %v509 = vrot.slane %v504, %v508
    %v511 = vsel %vm345, %v490, 0
    %513 = vmatprep.subr.mxu0 %v492
    %514 = vmatpush1.msra.mxu0 %v491
    %515 = vmatprep.subr.mxu0 %v495
    %516 = vmatpush1.msra.mxu0 %v494
    %517 = vmatprep.subr.mxu0 %v498
    %518 = vmatpush1.msra.mxu0 %v497
    %519 = vmatprep.subr.mxu0 0.0
    %520 = vmatpush1.msra.mxu0 0.0
    %521 = vmatprep.subr.mxu0 0.0
    %522 = vmatpush1.msra.mxu0 0.0
    %523 = vmatprep.subr.mxu0 0.0
    %524 = vmatpush1.msra.mxu0 0.0
    %525 = vmatprep.subr.mxu0 0.0
    %526 = vmatpush1.msra.mxu0 0.0
    %527 = vmatprep.subr.mxu0 0.0
    %528 = vmatpush1.msra.mxu0 0.0
    %529 = vmatprep.subr.mxu0 0.0
    %530 = vmatpush1.msra.mxu0 0.0
    %531 = vmatprep.subr.mxu0 0.0
    %532 = vmatpush1.msra.mxu0 0.0
    %533 = vmatprep.subr.mxu0 0.0
    %534 = vmatpush1.msra.mxu0 0.0
    %535 = vmatprep.subr.mxu0 0.0
    %536 = vmatpush1.msra.mxu0 0.0
    %537 = vmatprep.subr.mxu0 0.0
    %538 = vmatpush1.msra.mxu0 0.0
    %539 = vmatprep.subr.mxu0 0.0
    %540 = vmatpush1.msra.mxu0 0.0
    %541 = vmatprep.subr.mxu0 0.0
    %542 = vmatpush1.msra.mxu0 0.0
    %543 = vmatprep.subr.mxu0 0.0
    %544 = vmatpush1.msra.mxu0 0.0
    %545 = vmatprep.subr.mxu0 0.0
    %546 = vmatpush1.msra.mxu0 0.0
    %547 = vmatprep.subr.mxu0 0.0
    %548 = vmatpush1.msra.mxu0 0.0
    %549 = vmatprep.subr.mxu0 0.0
    %550 = vmatpush1.msra.mxu0 0.0
    %551 = vmatprep.subr.mxu0 0.0
    %552 = vmatpush1.msra.mxu0 0.0
    %553 = vmatprep.subr.mxu0 0.0
    %554 = vmatpush1.msra.mxu0 0.0
    %555 = vmatprep.subr.mxu0 0.0
    %556 = vmatpush1.msra.mxu0 0.0
    %557 = vmatprep.subr.mxu0 0.0
    %558 = vmatpush1.msra.mxu0 0.0
    %559 = vmatprep.subr.mxu0 0.0
    %560 = vmatpush1.msra.mxu0 0.0
    %561 = vmatprep.subr.mxu0 0.0
    %562 = vmatpush1.msra.mxu0 0.0
    %563 = vmatprep.subr.mxu0 0.0
    %564 = vmatpush1.msra.mxu0 0.0
    %565 = vmatprep.subr.mxu0 0.0
    %566 = vmatpush1.msra.mxu0 0.0
    %567 = vmatprep.subr.mxu0 0.0
    %568 = vmatpush1.msra.mxu0 0.0
    %569 = vmatprep.subr.mxu0 0.0
    %570 = vmatpush1.msra.mxu0 0.0
    %571 = vmatprep.subr.mxu0 0.0
    %572 = vmatpush1.msra.mxu0 0.0
    %573 = vmatprep.subr.mxu0 0.0
    %574 = vmatpush1.msra.mxu0 0.0
    %575 = vmatprep.subr.mxu0 0.0
    %576 = vmatpush1.msra.mxu0 0.0
    %577 = vmatprep.mubr.f32.mxu0 0.0
    %578 = vmatmul.mubr.f32.gmra.mrb[0].mxu0 %v511
    %v579 = vpop.f32.mrb[0].mxu0
    %v580 = vadd.f32 %v509, %v579
    %v581 = vpop.f32.mrb[0].mxu0
    %v582 = vadd.f32 %v509, %v581
    %583 = vdwg.mxu0
    %584 = vmatprep.subr.mxu0 0.0
    %585 = vmatpush1.msra.mxu0 %v493
    %586 = vmatprep.subr.mxu0 0.0
    %587 = vmatpush1.msra.mxu0 %v496
    %588 = vmatprep.subr.mxu0 0.0
    %589 = vmatpush1.msra.mxu0 %v499
    %590 = vmatprep.subr.mxu0 0.0
    %591 = vmatpush1.msra.mxu0 0.0
    %592 = vmatprep.subr.mxu0 0.0
    %593 = vmatpush1.msra.mxu0 0.0
    %594 = vmatprep.subr.mxu0 0.0
    %595 = vmatpush1.msra.mxu0 0.0
    %596 = vmatprep.subr.mxu0 0.0
    %597 = vmatpush1.msra.mxu0 0.0
    %598 = vmatprep.subr.mxu0 0.0
    %599 = vmatpush1.msra.mxu0 0.0
    %600 = vmatprep.subr.mxu0 0.0
    %601 = vmatpush1.msra.mxu0 0.0
    %602 = vmatprep.subr.mxu0 0.0
    %603 = vmatpush1.msra.mxu0 0.0
    %604 = vmatprep.subr.mxu0 0.0
    %605 = vmatpush1.msra.mxu0 0.0
    %606 = vmatprep.subr.mxu0 0.0
    %607 = vmatpush1.msra.mxu0 0.0
    %608 = vmatprep.subr.mxu0 0.0
    %609 = vmatpush1.msra.mxu0 0.0
    %610 = vmatprep.subr.mxu0 0.0
    %611 = vmatpush1.msra.mxu0 0.0
    %612 = vmatprep.subr.mxu0 0.0
    %613 = vmatpush1.msra.mxu0 0.0
    %614 = vmatprep.subr.mxu0 0.0
    %615 = vmatpush1.msra.mxu0 0.0
    %616 = vmatprep.subr.mxu0 0.0
    %617 = vmatpush1.msra.mxu0 0.0
    %618 = vmatprep.subr.mxu0 0.0
    %619 = vmatpush1.msra.mxu0 0.0
    %620 = vmatprep.subr.mxu0 0.0
    %621 = vmatpush1.msra.mxu0 0.0
    %622 = vmatprep.subr.mxu0 0.0
    %623 = vmatpush1.msra.mxu0 0.0
    %624 = vmatprep.subr.mxu0 0.0
    %625 = vmatpush1.msra.mxu0 0.0
    %626 = vmatprep.subr.mxu0 0.0
    %627 = vmatpush1.msra.mxu0 0.0
    %628 = vmatprep.subr.mxu0 0.0
    %629 = vmatpush1.msra.mxu0 0.0
    %630 = vmatprep.subr.mxu0 0.0
    %631 = vmatpush1.msra.mxu0 0.0
    %632 = vmatprep.subr.mxu0 0.0
    %633 = vmatpush1.msra.mxu0 0.0
    %634 = vmatprep.subr.mxu0 0.0
    %635 = vmatpush1.msra.mxu0 0.0
    %636 = vmatprep.subr.mxu0 0.0
    %637 = vmatpush1.msra.mxu0 0.0
    %638 = vmatprep.subr.mxu0 0.0
    %639 = vmatpush1.msra.mxu0 0.0
    %640 = vmatprep.subr.mxu0 0.0
    %641 = vmatpush1.msra.mxu0 0.0
    %642 = vmatprep.subr.mxu0 0.0
    %643 = vmatpush1.msra.mxu0 0.0
    %644 = vmatprep.subr.mxu0 0.0
    %645 = vmatpush1.msra.mxu0 0.0
    %646 = vmatprep.subr.mxu0 0.0
    %647 = vmatpush1.msra.mxu0 0.0
    %648 = vmatprep.mubr.f32.mxu0 0.0
    %649 = vmatmul.mubr.f32.gmra.mrb[0].mxu0 %v511
    %v650 = vpop.f32.mrb[0].mxu0
    %v651 = vadd.f32 %v509, %v650
    %v652 = vpop.f32.mrb[0].mxu0
    %653 = vdwg.mxu0
    %v654 = vadd.f32 %v580, %v416
    %v655 = vadd.f32 %v582, %v418
    %v656 = vadd.f32 %v651, %v487
    %v660 = vrot.slane %v416, 1
    %v661 = vrot.slane %v418, 1
    %v662 = vrot.slane %v487, 1
    %663 = vrot.lane.b32.xlu0 %v660, 127
    %v664 = vpop.permute.xlu0 %663
    %665 = vrot.lane.b32.xlu0 %v661, 127
    %v666 = vpop.permute.xlu0 %665
    %667 = vrot.lane.b32.xlu0 %v662, 127
    %v668 = vpop.permute.xlu0 %667
    %vm669 = vcmask 1039360
    %v670 = vsel %vm669, %v664, %v666
    %v671 = vsel %vm669, %v666, %v668
    %v675 = vadd.f32 %v654, %v670
    %v676 = vadd.f32 %v655, %v671
    %v677 = vadd.f32 %v656, %v668
    %v678 = vrot.slane %v416, 2
    %v679 = vrot.slane %v418, 2
    %v680 = vrot.slane %v487, 2
    %681 = vrot.lane.b32.xlu0 %v678, 126
    %v682 = vpop.permute.xlu0 %681
    %683 = vrot.lane.b32.xlu0 %v679, 126
    %v684 = vpop.permute.xlu0 %683
    %685 = vrot.lane.b32.xlu0 %v680, 126
    %v686 = vpop.permute.xlu0 %685
    %vm687 = vcmask 1031168
    %v688 = vsel %vm687, %v682, %v684
    %v689 = vsel %vm687, %v684, %v686
    %v693 = vadd.f32 %v675, %v688
    %v694 = vadd.f32 %v676, %v689
    %v695 = vadd.f32 %v677, %v686
    %v696 = vrot.slane %v416, 3
    %v697 = vrot.slane %v418, 3
    %v698 = vrot.slane %v487, 3
    %699 = vrot.lane.b32.xlu0 %v696, 125
    %v700 = vpop.permute.xlu0 %699
    %701 = vrot.lane.b32.xlu0 %v697, 125
    %v702 = vpop.permute.xlu0 %701
    %703 = vrot.lane.b32.xlu0 %v698, 125
    %v704 = vpop.permute.xlu0 %703
    %vm705 = vcmask 1022976
    %v706 = vsel %vm705, %v700, %v702
    %v707 = vsel %vm705, %v702, %v704
    %v711 = vadd.f32 %v693, %v706
    %v712 = vadd.f32 %v694, %v707
    %v713 = vadd.f32 %v695, %v704
    %v714 = vrot.slane %v416, 4
    %v715 = vrot.slane %v418, 4
    %v716 = vrot.slane %v487, 4
    %717 = vrot.lane.b32.xlu0 %v714, 124
    %v718 = vpop.permute.xlu0 %717
    %719 = vrot.lane.b32.xlu0 %v715, 124
    %v720 = vpop.permute.xlu0 %719
    %721 = vrot.lane.b32.xlu0 %v716, 124
    %v722 = vpop.permute.xlu0 %721
    %vm723 = vcmask 1014784
    %v724 = vsel %vm723, %v718, %v720
    %v725 = vsel %vm723, %v720, %v722
    %v729 = vadd.f32 %v711, %v724
    %v730 = vadd.f32 %v712, %v725
    %v731 = vadd.f32 %v713, %v722
    %vm732 = vcmp.ge.f32.partialorder %v729, 0.0
    %vm733 = vcmp.ge.f32.partialorder %v730, 0.0
    %vm734 = vcmp.ge.f32.partialorder %v731, 0.0
    %v735 = vmul.f32 %v729, 0.01
    %v736 = vmul.f32 %v730, 0.01
    %v737 = vmul.f32 %v731, 0.01
    %v738 = vsel %vm732, %v729, %v735
    %v739 = vsel %vm733, %v730, %v736
    %v740 = vsel %vm734, %v731, %v737
    %v741 = vpack.c.bf16 %v738, %v738
    %v742 = vpack.c.bf16 %v739, %v739
    %v743 = vpack.c.bf16 %v740, %v740
    %v744 = vld [vmem:[%s6] sm:$0xf]
    %v745 = vld [vmem:[%s6 + $0x4] sm:$0xf]
    %v746 = vld [vmem:[%s6 + $0x8] sm:$0xf]
    %v747 = vld [vmem:[%s6 + $0xc] sm:$0xf]
    %v748 = vld [vmem:[%s6 + $0x10] sm:$0xf]
    %v749 = vld [vmem:[%s6 + $0x14] sm:$0xf]
    %v750 = vld [vmem:[%s6 + $0x18] sm:$0xf]
    %v751 = vld [vmem:[%s6 + $0x1c] sm:$0xf]
    %v752 = vld [vmem:[%s6 + $0x20] sm:$0xf]
    %v753 = vld [vmem:[%s6 + $0x24] sm:$0xf]
    %v754 = vld [vmem:[%s6 + $0x28] sm:$0xf]
    %v755 = vld [vmem:[%s6 + $0x2c] sm:$0xf]
    %v756 = vld [vmem:[%s6 + $0x30] sm:$0xf]
    %v757 = vld [vmem:[%s6 + $0x34] sm:$0xf]
    %v758 = vld [vmem:[%s6 + $0x38] sm:$0xf]
    %v759 = vld [vmem:[%s6 + $0x3c] sm:$0xf]
    %v760 = vld [vmem:[%s6 + $0x40] sm:$0xf]
    %v761 = vld [vmem:[%s6 + $0x44] sm:$0xf]
    %v762 = vld [vmem:[%s6 + $0x48] sm:$0xf]
    %v763 = vld [vmem:[%s6 + $0x4c] sm:$0xf]
    %v764 = vld [vmem:[%s6 + $0x50] sm:$0xf]
    %v765 = vld [vmem:[%s6 + $0x54] sm:$0xf]
    %v766 = vld [vmem:[%s6 + $0x58] sm:$0xf]
    %v767 = vld [vmem:[%s6 + $0x5c] sm:$0xf]
    %v768 = vld [vmem:[%s6 + $0x60] sm:$0xf]
    %v769 = vld [vmem:[%s6 + $0x64] sm:$0xf]
    %v770 = vld [vmem:[%s6 + $0x68] sm:$0xf]
    %v771 = vld [vmem:[%s6 + $0x6c] sm:$0xf]
    %v772 = vld [vmem:[%s6 + $0x70] sm:$0xf]
    %v773 = vld [vmem:[%s6 + $0x74] sm:$0xf]
    %v774 = vld [vmem:[%s6 + $0x78] sm:$0xf]
    %v775 = vld [vmem:[%s6 + $0x7c] sm:$0xf]
    %v776 = vld [vmem:[%s6 + $0x80] sm:$0xf]
    %v777 = vld [vmem:[%s6 + $0x84] sm:$0xf]
    %v778 = vld [vmem:[%s6 + $0x88] sm:$0xf]
    %v779 = vld [vmem:[%s6 + $0x8c] sm:$0xf]
    %v780 = vld [vmem:[%s6 + $0x90] sm:$0xf]
    %v781 = vld [vmem:[%s6 + $0x94] sm:$0xf]
    %v782 = vld [vmem:[%s6 + $0x98] sm:$0xf]
    %v783 = vld [vmem:[%s6 + $0x9c] sm:$0xf]
    %v784 = vld [vmem:[%s7] sm:$0x1]
    %v825 = vunpack.c.l.b16 %v744
    %v826 = vunpack.c.l.b16 %v745
    %v827 = vunpack.c.l.b16 %v746
    %v828 = vunpack.c.l.b16 %v747
    %v829 = vunpack.c.l.b16 %v748
    %v830 = vunpack.c.l.b16 %v749
    %v831 = vunpack.c.l.b16 %v750
    %v832 = vunpack.c.l.b16 %v751
    %v833 = vunpack.c.l.b16 %v752
    %v834 = vunpack.c.l.b16 %v753
    %v835 = vunpack.c.l.b16 %v754
    %v836 = vunpack.c.l.b16 %v755
    %v837 = vunpack.c.l.b16 %v756
    %v838 = vunpack.c.l.b16 %v757
    %v839 = vunpack.c.l.b16 %v758
    %v840 = vunpack.c.l.b16 %v759
    %v841 = vunpack.c.l.b16 %v760
    %v842 = vunpack.c.l.b16 %v761
    %v843 = vunpack.c.l.b16 %v762
    %v844 = vunpack.c.l.b16 %v763
    %v845 = vunpack.c.l.b16 %v764
    %v846 = vunpack.c.l.b16 %v765
    %v847 = vunpack.c.l.b16 %v766
    %v848 = vunpack.c.l.b16 %v767
    %v849 = vunpack.c.l.b16 %v768
    %v850 = vunpack.c.l.b16 %v769
    %v851 = vunpack.c.l.b16 %v770
    %v852 = vunpack.c.l.b16 %v771
    %v853 = vunpack.c.l.b16 %v772
    %v854 = vunpack.c.l.b16 %v773
    %v855 = vunpack.c.l.b16 %v774
    %v856 = vunpack.c.l.b16 %v775
    %v857 = vunpack.c.l.b16 %v776
    %v858 = vunpack.c.l.b16 %v777
    %v859 = vunpack.c.l.b16 %v778
    %v860 = vunpack.c.l.b16 %v779
    %v861 = vunpack.c.l.b16 %v780
    %v862 = vunpack.c.l.b16 %v781
    %v863 = vunpack.c.l.b16 %v782
    %v864 = vunpack.c.l.b16 %v783
    %v865 = vpack.c.b16 %v826, %v825
    %v866 = vpack.c.b16 %v828, %v827
    %v867 = vpack.c.b16 %v830, %v829
    %v868 = vpack.c.b16 %v832, %v831
    %v869 = vpack.c.b16 %v834, %v833
    %v870 = vpack.c.b16 %v836, %v835
    %v871 = vpack.c.b16 %v838, %v837
    %v872 = vpack.c.b16 %v840, %v839
    %v873 = vpack.c.b16 %v842, %v841
    %v874 = vpack.c.b16 %v844, %v843
    %v875 = vpack.c.b16 %v846, %v845
    %v876 = vpack.c.b16 %v848, %v847
    %v877 = vpack.c.b16 %v850, %v849
    %v878 = vpack.c.b16 %v852, %v851
    %v879 = vpack.c.b16 %v854, %v853
    %v880 = vpack.c.b16 %v856, %v855
    %v881 = vpack.c.b16 %v858, %v857
    %v882 = vpack.c.b16 %v860, %v859
    %v883 = vpack.c.b16 %v862, %v861
    %v884 = vpack.c.b16 %v864, %v863
    %vm905 = vcmask 523264
    %v907 = vsel %vm905, %v743, 0
    %909 = vmatprep.subr.bf16.mxu0 0
    %910 = vmatpush1.bf16.msra.mxu0 %v865
    %911 = vmatprep.subr.bf16.mxu0 0
    %912 = vmatpush1.bf16.msra.mxu0 %v866
    %913 = vmatprep.subr.bf16.mxu0 0
    %914 = vmatpush1.bf16.msra.mxu0 %v867
    %915 = vmatprep.subr.bf16.mxu0 0
    %916 = vmatpush1.bf16.msra.mxu0 %v868
    %917 = vmatprep.subr.bf16.mxu0 0
    %918 = vmatpush1.bf16.msra.mxu0 %v869
    %919 = vmatprep.subr.bf16.mxu0 0
    %920 = vmatpush1.bf16.msra.mxu0 %v870
    %921 = vmatprep.subr.bf16.mxu0 0
    %922 = vmatpush1.bf16.msra.mxu0 %v871
    %923 = vmatprep.subr.bf16.mxu0 0
    %924 = vmatpush1.bf16.msra.mxu0 %v872
    %925 = vmatprep.subr.bf16.mxu0 0
    %926 = vmatpush1.bf16.msra.mxu0 %v873
    %927 = vmatprep.subr.bf16.mxu0 0
    %928 = vmatpush1.bf16.msra.mxu0 %v874
    %929 = vmatprep.subr.bf16.mxu0 0
    %930 = vmatpush1.bf16.msra.mxu0 %v875
    %931 = vmatprep.subr.bf16.mxu0 0
    %932 = vmatpush1.bf16.msra.mxu0 %v876
    %933 = vmatprep.subr.bf16.mxu0 0
    %934 = vmatpush1.bf16.msra.mxu0 %v877
    %935 = vmatprep.subr.bf16.mxu0 0
    %936 = vmatpush1.bf16.msra.mxu0 %v878
    %937 = vmatprep.subr.bf16.mxu0 0
    %938 = vmatpush1.bf16.msra.mxu0 %v879
    %939 = vmatprep.subr.bf16.mxu0 0
    %940 = vmatpush1.bf16.msra.mxu0 %v880
    %941 = vmatprep.mubr.bf16.mxu0 %v742
    %942 = vmatmul.mubr.bf16.gmra.mrb[0].mxu0 %v741
    %v943 = vpop.f32.mrb[0].mxu0
    %v944 = vadd.f32 %v784, %v943
    %v945 = vpop.f32.mrb[0].mxu0
    %v946 = vpop.f32.mrb[0].mxu0
    %v947 = vpop.f32.mrb[0].mxu0
    %948 = vdwg.mxu0
    %949 = vmatprep.subr.bf16.mxu0 0
    %950 = vmatpush1.bf16.msra.mxu0 %v881
    %951 = vmatprep.subr.bf16.mxu0 0
    %952 = vmatpush1.bf16.msra.mxu0 %v882
    %953 = vmatprep.subr.bf16.mxu0 0
    %954 = vmatpush1.bf16.msra.mxu0 %v883
    %955 = vmatprep.subr.bf16.mxu0 0
    %956 = vmatpush1.bf16.msra.mxu0 %v884
    %957 = vmatprep.subr.bf16.mxu0 0
    %958 = vmatpush1.bf16.msra.mxu0 0
    %959 = vmatprep.subr.bf16.mxu0 0
    %960 = vmatpush1.bf16.msra.mxu0 0
    %961 = vmatprep.subr.bf16.mxu0 0
    %962 = vmatpush1.bf16.msra.mxu0 0
    %963 = vmatprep.subr.bf16.mxu0 0
    %964 = vmatpush1.bf16.msra.mxu0 0
    %965 = vmatprep.subr.bf16.mxu0 0
    %966 = vmatpush1.bf16.msra.mxu0 0
    %967 = vmatprep.subr.bf16.mxu0 0
    %968 = vmatpush1.bf16.msra.mxu0 0
    %969 = vmatprep.subr.bf16.mxu0 0
    %970 = vmatpush1.bf16.msra.mxu0 0
    %971 = vmatprep.subr.bf16.mxu0 0
    %972 = vmatpush1.bf16.msra.mxu0 0
    %973 = vmatprep.subr.bf16.mxu0 0
    %974 = vmatpush1.bf16.msra.mxu0 0
    %975 = vmatprep.subr.bf16.mxu0 0
    %976 = vmatpush1.bf16.msra.mxu0 0
    %977 = vmatprep.subr.bf16.mxu0 0
    %978 = vmatpush1.bf16.msra.mxu0 0
    %979 = vmatprep.subr.bf16.mxu0 0
    %980 = vmatpush1.bf16.msra.mxu0 0
    %981 = vmatprep.mubr.bf16.mxu0 0
    %982 = vmatmul.mubr.bf16.gmra.mrb[0].mxu0 %v907
    %v983 = vpop.f32.mrb[0].mxu0
    %v984 = vadd.f32 %v944, %v983
    %v985 = vpop.f32.mrb[0].mxu0
    %v986 = vpop.f32.mrb[0].mxu0
    %v987 = vpop.f32.mrb[0].mxu0
    %988 = vdwg.mxu0
    %v989 = vld [vmem:[%s8] sm:$0xf]
    %v990 = vld [vmem:[%s8 + $0x4] sm:$0xf]
    %v991 = vld [vmem:[%s8 + $0x8] sm:$0xf]
    %v992 = vld [vmem:[%s8 + $0xc] sm:$0xf]
    %v993 = vld [vmem:[%s8 + $0x10] sm:$0xf]
    %v994 = vld [vmem:[%s8 + $0x14] sm:$0xf]
    %v995 = vld [vmem:[%s8 + $0x18] sm:$0xf]
    %v996 = vld [vmem:[%s8 + $0x1c] sm:$0xf]
    %s997 = scalar_lea.vmem %s8, 32
    %v998 = vld [vmem:[%s997] sm:$0xf]
    %v999 = vld [vmem:[%s997 + $0x4] sm:$0xf]
    %v1000 = vld [vmem:[%s997 + $0x8] sm:$0xf]
    %v1001 = vld [vmem:[%s997 + $0xc] sm:$0xf]
    %v1002 = vld [vmem:[%s997 + $0x10] sm:$0xf]
    %v1003 = vld [vmem:[%s997 + $0x14] sm:$0xf]
    %v1004 = vld [vmem:[%s997 + $0x18] sm:$0xf]
    %v1005 = vld [vmem:[%s997 + $0x1c] sm:$0xf]
    %s1006 = scalar_lea.vmem %s8, 64
    %v1007 = vld [vmem:[%s1006] sm:$0xf]
    %v1008 = vld [vmem:[%s1006 + $0x4] sm:$0xf]
    %v1009 = vld [vmem:[%s1006 + $0x8] sm:$0xf]
    %v1010 = vld [vmem:[%s1006 + $0xc] sm:$0xf]
    %v1011 = vld [vmem:[%s1006 + $0x10] sm:$0xf]
    %v1012 = vld [vmem:[%s1006 + $0x14] sm:$0xf]
    %v1013 = vld [vmem:[%s1006 + $0x18] sm:$0xf]
    %v1014 = vld [vmem:[%s1006 + $0x1c] sm:$0xf]
    %v1015 = vld [vmem:[%s9] sm:$0x1]
    %s1016 = scalar_lea.vmem %s9, 1
    %v1017 = vld [vmem:[%s1016] sm:$0x1]
    %s1018 = scalar_lea.vmem %s9, 2
    %v1019 = vld [vmem:[%s1018] sm:$0x1]
    %s1020 = scalar_lea.vmem %s9, 3
    %v1021 = vld [vmem:[%s1020] sm:$0x1]
    %s1022 = scalar_lea.vmem %s9, 4
    %v1023 = vld [vmem:[%s1022] sm:$0x1]
    %s1024 = scalar_lea.vmem %s9, 5
    %v1025 = vld [vmem:[%s1024] sm:$0x1]
    %s1026 = scalar_lea.vmem %s9, 6
    %v1027 = vld [vmem:[%s1026] sm:$0x1]
    %v1028 = vpack.c.bf16 %v984, %v984
    %v1037 = vunpack.c.l.b16 %v989
    %v1038 = vunpack.c.l.b16 %v990
    %v1039 = vunpack.c.l.b16 %v991
    %v1040 = vunpack.c.l.b16 %v992
    %v1041 = vunpack.c.l.b16 %v993
    %v1042 = vunpack.c.l.b16 %v994
    %v1043 = vunpack.c.l.b16 %v995
    %v1044 = vunpack.c.l.b16 %v996
    %v1045 = vpack.c.b16 %v1038, %v1037
    %v1046 = vpack.c.b16 %v1040, %v1039
    %v1047 = vpack.c.b16 %v1042, %v1041
    %v1048 = vpack.c.b16 %v1044, %v1043
    %v1054 = vsel %vm905, %v1028, 0
    %1056 = vmatprep.subr.bf16.mxu0 0
    %1057 = vmatpush1.bf16.msra.mxu0 %v1045
    %1058 = vmatprep.subr.bf16.mxu0 0
    %1059 = vmatpush1.bf16.msra.mxu0 %v1046
    %1060 = vmatprep.subr.bf16.mxu0 0
    %1061 = vmatpush1.bf16.msra.mxu0 %v1047
    %1062 = vmatprep.subr.bf16.mxu0 0
    %1063 = vmatpush1.bf16.msra.mxu0 %v1048
    %1064 = vmatprep.subr.bf16.mxu0 0
    %1065 = vmatpush1.bf16.msra.mxu0 0
    %1066 = vmatprep.subr.bf16.mxu0 0
    %1067 = vmatpush1.bf16.msra.mxu0 0
    %1068 = vmatprep.subr.bf16.mxu0 0
    %1069 = vmatpush1.bf16.msra.mxu0 0
    %1070 = vmatprep.subr.bf16.mxu0 0
    %1071 = vmatpush1.bf16.msra.mxu0 0
    %1072 = vmatprep.subr.bf16.mxu0 0
    %1073 = vmatpush1.bf16.msra.mxu0 0
    %1074 = vmatprep.subr.bf16.mxu0 0
    %1075 = vmatpush1.bf16.msra.mxu0 0
    %1076 = vmatprep.subr.bf16.mxu0 0
    %1077 = vmatpush1.bf16.msra.mxu0 0
    %1078 = vmatprep.subr.bf16.mxu0 0
    %1079 = vmatpush1.bf16.msra.mxu0 0
    %1080 = vmatprep.subr.bf16.mxu0 0
    %1081 = vmatpush1.bf16.msra.mxu0 0
    %1082 = vmatprep.subr.bf16.mxu0 0
    %1083 = vmatpush1.bf16.msra.mxu0 0
    %1084 = vmatprep.subr.bf16.mxu0 0
    %1085 = vmatpush1.bf16.msra.mxu0 0
    %1086 = vmatprep.subr.bf16.mxu0 0
    %1087 = vmatpush1.bf16.msra.mxu0 0
    %1088 = vmatprep.mubr.bf16.mxu0 0
    %1089 = vmatmul.mubr.bf16.gmra.mrb[0].mxu0 %v1054
    %v1090 = vpop.f32.mrb[0].mxu0
    %v1091 = vadd.f32 %v1015, %v1090
    %v1092 = vpop.f32.mrb[0].mxu0
    %v1093 = vpop.f32.mrb[0].mxu0
    %v1094 = vpop.f32.mrb[0].mxu0
    %1095 = vdwg.mxu0
    %v1096 = vadd.f32 %v984, %v1091
    %vm1097 = vcmask 516096
    %v1098 = vsel %vm1097, %v1096, 0.0
    %1099 = vadd.xlane.f32.xlu0 %v1098
    %v1100 = vpop.xlane.xlu0 %1099
    %v1101 = vrcp.pop 64.0
    %v1102 = vmul.f32 %v1100, %v1101
    %v1103 = vsub.f32 %v1096, %v1102
    %v1104 = vmul.f32 %v1103, %v1103
    %v1105 = vsel %vm1097, %v1104, 0.0
    %1106 = vadd.xlane.f32.xlu0 %v1105
    %v1107 = vpop.xlane.xlu0 %1106
    %v1108 = vmul.f32 %v1107, %v1101
    %v1109 = vadd.f32 %v1108, 1e-05
    %v1110 = vrsqrt.pop %v1109
    %v1111 = vmul.f32 %v1103, %v1110
    %v1112 = vmul.f32 %v1111, %v1017
    %v1113 = vadd.f32 %v1112, %v1019
    %v1114 = vpack.c.bf16 %v1113, %v1113
    %v1123 = vunpack.c.l.b16 %v998
    %v1124 = vunpack.c.l.b16 %v999
    %v1125 = vunpack.c.l.b16 %v1000
    %v1126 = vunpack.c.l.b16 %v1001
    %v1127 = vunpack.c.l.b16 %v1002
    %v1128 = vunpack.c.l.b16 %v1003
    %v1129 = vunpack.c.l.b16 %v1004
    %v1130 = vunpack.c.l.b16 %v1005
    %v1131 = vpack.c.b16 %v1124, %v1123
    %v1132 = vpack.c.b16 %v1126, %v1125
    %v1133 = vpack.c.b16 %v1128, %v1127
    %v1134 = vpack.c.b16 %v1130, %v1129
    %v1140 = vsel %vm905, %v1114, 0
    %1142 = vmatprep.subr.bf16.mxu0 0
    %1143 = vmatpush1.bf16.msra.mxu0 %v1131
    %1144 = vmatprep.subr.bf16.mxu0 0
    %1145 = vmatpush1.bf16.msra.mxu0 %v1132
    %1146 = vmatprep.subr.bf16.mxu0 0
    %1147 = vmatpush1.bf16.msra.mxu0 %v1133
    %1148 = vmatprep.subr.bf16.mxu0 0
    %1149 = vmatpush1.bf16.msra.mxu0 %v1134
    %1150 = vmatprep.subr.bf16.mxu0 0
    %1151 = vmatpush1.bf16.msra.mxu0 0
    %1152 = vmatprep.subr.bf16.mxu0 0
    %1153 = vmatpush1.bf16.msra.mxu0 0
    %1154 = vmatprep.subr.bf16.mxu0 0
    %1155 = vmatpush1.bf16.msra.mxu0 0
    %1156 = vmatprep.subr.bf16.mxu0 0
    %1157 = vmatpush1.bf16.msra.mxu0 0
    %1158 = vmatprep.subr.bf16.mxu0 0
    %1159 = vmatpush1.bf16.msra.mxu0 0
    %1160 = vmatprep.subr.bf16.mxu0 0
    %1161 = vmatpush1.bf16.msra.mxu0 0
    %1162 = vmatprep.subr.bf16.mxu0 0
    %1163 = vmatpush1.bf16.msra.mxu0 0
    %1164 = vmatprep.subr.bf16.mxu0 0
    %1165 = vmatpush1.bf16.msra.mxu0 0
    %1166 = vmatprep.subr.bf16.mxu0 0
    %1167 = vmatpush1.bf16.msra.mxu0 0
    %1168 = vmatprep.subr.bf16.mxu0 0
    %1169 = vmatpush1.bf16.msra.mxu0 0
    %1170 = vmatprep.subr.bf16.mxu0 0
    %1171 = vmatpush1.bf16.msra.mxu0 0
    %1172 = vmatprep.subr.bf16.mxu0 0
    %1173 = vmatpush1.bf16.msra.mxu0 0
    %1174 = vmatprep.mubr.bf16.mxu0 0
    %1175 = vmatmul.mubr.bf16.gmra.mrb[0].mxu0 %v1140
    %v1176 = vpop.f32.mrb[0].mxu0
    %v1177 = vadd.f32 %v1021, %v1176
    %v1178 = vpop.f32.mrb[0].mxu0
    %v1179 = vpop.f32.mrb[0].mxu0
    %v1180 = vpop.f32.mrb[0].mxu0
    %1181 = vdwg.mxu0
    %v1182 = vmax.f32 %v1177, 0.0
    %v1183 = vpack.c.bf16 %v1182, %v1182
    %v1192 = vunpack.c.l.b16 %v1007
    %v1193 = vunpack.c.l.b16 %v1008
    %v1194 = vunpack.c.l.b16 %v1009
    %v1195 = vunpack.c.l.b16 %v1010
    %v1196 = vunpack.c.l.b16 %v1011
    %v1197 = vunpack.c.l.b16 %v1012
    %v1198 = vunpack.c.l.b16 %v1013
    %v1199 = vunpack.c.l.b16 %v1014
    %v1200 = vpack.c.b16 %v1193, %v1192
    %v1201 = vpack.c.b16 %v1195, %v1194
    %v1202 = vpack.c.b16 %v1197, %v1196
    %v1203 = vpack.c.b16 %v1199, %v1198
    %v1209 = vsel %vm905, %v1183, 0
    %1211 = vmatprep.subr.bf16.mxu0 0
    %1212 = vmatpush1.bf16.msra.mxu0 %v1200
    %1213 = vmatprep.subr.bf16.mxu0 0
    %1214 = vmatpush1.bf16.msra.mxu0 %v1201
    %1215 = vmatprep.subr.bf16.mxu0 0
    %1216 = vmatpush1.bf16.msra.mxu0 %v1202
    %1217 = vmatprep.subr.bf16.mxu0 0
    %1218 = vmatpush1.bf16.msra.mxu0 %v1203
    %1219 = vmatprep.subr.bf16.mxu0 0
    %1220 = vmatpush1.bf16.msra.mxu0 0
    %1221 = vmatprep.subr.bf16.mxu0 0
    %1222 = vmatpush1.bf16.msra.mxu0 0
    %1223 = vmatprep.subr.bf16.mxu0 0
    %1224 = vmatpush1.bf16.msra.mxu0 0
    %1225 = vmatprep.subr.bf16.mxu0 0
    %1226 = vmatpush1.bf16.msra.mxu0 0
    %1227 = vmatprep.subr.bf16.mxu0 0
    %1228 = vmatpush1.bf16.msra.mxu0 0
    %1229 = vmatprep.subr.bf16.mxu0 0
    %1230 = vmatpush1.bf16.msra.mxu0 0
    %1231 = vmatprep.subr.bf16.mxu0 0
    %1232 = vmatpush1.bf16.msra.mxu0 0
    %1233 = vmatprep.subr.bf16.mxu0 0
    %1234 = vmatpush1.bf16.msra.mxu0 0
    %1235 = vmatprep.subr.bf16.mxu0 0
    %1236 = vmatpush1.bf16.msra.mxu0 0
    %1237 = vmatprep.subr.bf16.mxu0 0
    %1238 = vmatpush1.bf16.msra.mxu0 0
    %1239 = vmatprep.subr.bf16.mxu0 0
    %1240 = vmatpush1.bf16.msra.mxu0 0
    %1241 = vmatprep.subr.bf16.mxu0 0
    %1242 = vmatpush1.bf16.msra.mxu0 0
    %1243 = vmatprep.mubr.bf16.mxu0 0
    %1244 = vmatmul.mubr.bf16.gmra.mrb[0].mxu0 %v1209
    %v1245 = vpop.f32.mrb[0].mxu0
    %v1246 = vadd.f32 %v1023, %v1245
    %v1247 = vpop.f32.mrb[0].mxu0
    %v1248 = vpop.f32.mrb[0].mxu0
    %v1249 = vpop.f32.mrb[0].mxu0
    %1250 = vdwg.mxu0
    %v1251 = vadd.f32 %v1113, %v1246
    %v1252 = vsel %vm1097, %v1251, 0.0
    %1253 = vadd.xlane.f32.xlu0 %v1252
    %v1254 = vpop.xlane.xlu0 %1253
    %v1255 = vmul.f32 %v1254, %v1101
    %v1256 = vsub.f32 %v1251, %v1255
    %v1257 = vmul.f32 %v1256, %v1256
    %v1258 = vsel %vm1097, %v1257, 0.0
    %1259 = vadd.xlane.f32.xlu0 %v1258
    %v1260 = vpop.xlane.xlu0 %1259
    %v1261 = vmul.f32 %v1260, %v1101
    %v1262 = vadd.f32 %v1261, 1e-05
    %v1263 = vrsqrt.pop %v1262
    %v1264 = vmul.f32 %v1256, %v1263
    %v1265 = vmul.f32 %v1264, %v1025
    %v1266 = vadd.f32 %v1265, %v1027
    %s1267 = scalar_lea.vmem %s8, 96
    %v1268 = vld [vmem:[%s1267] sm:$0xf]
    %v1269 = vld [vmem:[%s1267 + $0x4] sm:$0xf]
    %v1270 = vld [vmem:[%s1267 + $0x8] sm:$0xf]
    %v1271 = vld [vmem:[%s1267 + $0xc] sm:$0xf]
    %v1272 = vld [vmem:[%s1267 + $0x10] sm:$0xf]
    %v1273 = vld [vmem:[%s1267 + $0x14] sm:$0xf]
    %v1274 = vld [vmem:[%s1267 + $0x18] sm:$0xf]
    %v1275 = vld [vmem:[%s1267 + $0x1c] sm:$0xf]
    %s1276 = scalar_lea.vmem %s8, 128
    %v1277 = vld [vmem:[%s1276] sm:$0xf]
    %v1278 = vld [vmem:[%s1276 + $0x4] sm:$0xf]
    %v1279 = vld [vmem:[%s1276 + $0x8] sm:$0xf]
    %v1280 = vld [vmem:[%s1276 + $0xc] sm:$0xf]
    %v1281 = vld [vmem:[%s1276 + $0x10] sm:$0xf]
    %v1282 = vld [vmem:[%s1276 + $0x14] sm:$0xf]
    %v1283 = vld [vmem:[%s1276 + $0x18] sm:$0xf]
    %v1284 = vld [vmem:[%s1276 + $0x1c] sm:$0xf]
    %s1285 = scalar_lea.vmem %s8, 160
    %v1286 = vld [vmem:[%s1285] sm:$0xf]
    %v1287 = vld [vmem:[%s1285 + $0x4] sm:$0xf]
    %v1288 = vld [vmem:[%s1285 + $0x8] sm:$0xf]
    %v1289 = vld [vmem:[%s1285 + $0xc] sm:$0xf]
    %v1290 = vld [vmem:[%s1285 + $0x10] sm:$0xf]
    %v1291 = vld [vmem:[%s1285 + $0x14] sm:$0xf]
    %v1292 = vld [vmem:[%s1285 + $0x18] sm:$0xf]
    %v1293 = vld [vmem:[%s1285 + $0x1c] sm:$0xf]
    %s1294 = scalar_lea.vmem %s9, 7
    %v1295 = vld [vmem:[%s1294] sm:$0x1]
    %s1296 = scalar_lea.vmem %s9, 8
    %v1297 = vld [vmem:[%s1296] sm:$0x1]
    %s1298 = scalar_lea.vmem %s9, 9
    %v1299 = vld [vmem:[%s1298] sm:$0x1]
    %s1300 = scalar_lea.vmem %s9, 10
    %v1301 = vld [vmem:[%s1300] sm:$0x1]
    %s1302 = scalar_lea.vmem %s9, 11
    %v1303 = vld [vmem:[%s1302] sm:$0x1]
    %s1304 = scalar_lea.vmem %s9, 12
    %v1305 = vld [vmem:[%s1304] sm:$0x1]
    %s1306 = scalar_lea.vmem %s9, 13
    %v1307 = vld [vmem:[%s1306] sm:$0x1]
    %v1308 = vpack.c.bf16 %v1266, %v1266
    %v1317 = vunpack.c.l.b16 %v1268
    %v1318 = vunpack.c.l.b16 %v1269
    %v1319 = vunpack.c.l.b16 %v1270
    %v1320 = vunpack.c.l.b16 %v1271
    %v1321 = vunpack.c.l.b16 %v1272
    %v1322 = vunpack.c.l.b16 %v1273
    %v1323 = vunpack.c.l.b16 %v1274
    %v1324 = vunpack.c.l.b16 %v1275
    %v1325 = vpack.c.b16 %v1318, %v1317
    %v1326 = vpack.c.b16 %v1320, %v1319
    %v1327 = vpack.c.b16 %v1322, %v1321
    %v1328 = vpack.c.b16 %v1324, %v1323
    %v1334 = vsel %vm905, %v1308, 0
    %1336 = vmatprep.subr.bf16.mxu0 0
    %1337 = vmatpush1.bf16.msra.mxu0 %v1325
    %1338 = vmatprep.subr.bf16.mxu0 0
    %1339 = vmatpush1.bf16.msra.mxu0 %v1326
    %1340 = vmatprep.subr.bf16.mxu0 0
    %1341 = vmatpush1.bf16.msra.mxu0 %v1327
    %1342 = vmatprep.subr.bf16.mxu0 0
    %1343 = vmatpush1.bf16.msra.mxu0 %v1328
    %1344 = vmatprep.subr.bf16.mxu0 0
    %1345 = vmatpush1.bf16.msra.mxu0 0
    %1346 = vmatprep.subr.bf16.mxu0 0
    %1347 = vmatpush1.bf16.msra.mxu0 0
    %1348 = vmatprep.subr.bf16.mxu0 0
    %1349 = vmatpush1.bf16.msra.mxu0 0
    %1350 = vmatprep.subr.bf16.mxu0 0
    %1351 = vmatpush1.bf16.msra.mxu0 0
    %1352 = vmatprep.subr.bf16.mxu0 0
    %1353 = vmatpush1.bf16.msra.mxu0 0
    %1354 = vmatprep.subr.bf16.mxu0 0
    %1355 = vmatpush1.bf16.msra.mxu0 0
    %1356 = vmatprep.subr.bf16.mxu0 0
    %1357 = vmatpush1.bf16.msra.mxu0 0
    %1358 = vmatprep.subr.bf16.mxu0 0
    %1359 = vmatpush1.bf16.msra.mxu0 0
    %1360 = vmatprep.subr.bf16.mxu0 0
    %1361 = vmatpush1.bf16.msra.mxu0 0
    %1362 = vmatprep.subr.bf16.mxu0 0
    %1363 = vmatpush1.bf16.msra.mxu0 0
    %1364 = vmatprep.subr.bf16.mxu0 0
    %1365 = vmatpush1.bf16.msra.mxu0 0
    %1366 = vmatprep.subr.bf16.mxu0 0
    %1367 = vmatpush1.bf16.msra.mxu0 0
    %1368 = vmatprep.mubr.bf16.mxu0 0
    %1369 = vmatmul.mubr.bf16.gmra.mrb[0].mxu0 %v1334
    %v1370 = vpop.f32.mrb[0].mxu0
    %v1371 = vadd.f32 %v1295, %v1370
    %v1372 = vpop.f32.mrb[0].mxu0
    %v1373 = vpop.f32.mrb[0].mxu0
    %v1374 = vpop.f32.mrb[0].mxu0
    %1375 = vdwg.mxu0
    %v1376 = vadd.f32 %v1266, %v1371
    %v1377 = vsel %vm1097, %v1376, 0.0
    %1378 = vadd.xlane.f32.xlu0 %v1377
    %v1379 = vpop.xlane.xlu0 %1378
    %v1380 = vmul.f32 %v1379, %v1101
    %v1381 = vsub.f32 %v1376, %v1380
    %v1382 = vmul.f32 %v1381, %v1381
    %v1383 = vsel %vm1097, %v1382, 0.0
    %1384 = vadd.xlane.f32.xlu0 %v1383
    %v1385 = vpop.xlane.xlu0 %1384
    %v1386 = vmul.f32 %v1385, %v1101
    %v1387 = vadd.f32 %v1386, 1e-05
    %v1388 = vrsqrt.pop %v1387
    %v1389 = vmul.f32 %v1381, %v1388
    %v1390 = vmul.f32 %v1389, %v1297
    %v1391 = vadd.f32 %v1390, %v1299
    %v1392 = vpack.c.bf16 %v1391, %v1391
    %v1401 = vunpack.c.l.b16 %v1277
    %v1402 = vunpack.c.l.b16 %v1278
    %v1403 = vunpack.c.l.b16 %v1279
    %v1404 = vunpack.c.l.b16 %v1280
    %v1405 = vunpack.c.l.b16 %v1281
    %v1406 = vunpack.c.l.b16 %v1282
    %v1407 = vunpack.c.l.b16 %v1283
    %v1408 = vunpack.c.l.b16 %v1284
    %v1409 = vpack.c.b16 %v1402, %v1401
    %v1410 = vpack.c.b16 %v1404, %v1403
    %v1411 = vpack.c.b16 %v1406, %v1405
    %v1412 = vpack.c.b16 %v1408, %v1407
    %v1418 = vsel %vm905, %v1392, 0
    %1420 = vmatprep.subr.bf16.mxu0 0
    %1421 = vmatpush1.bf16.msra.mxu0 %v1409
    %1422 = vmatprep.subr.bf16.mxu0 0
    %1423 = vmatpush1.bf16.msra.mxu0 %v1410
    %1424 = vmatprep.subr.bf16.mxu0 0
    %1425 = vmatpush1.bf16.msra.mxu0 %v1411
    %1426 = vmatprep.subr.bf16.mxu0 0
    %1427 = vmatpush1.bf16.msra.mxu0 %v1412
    %1428 = vmatprep.subr.bf16.mxu0 0
    %1429 = vmatpush1.bf16.msra.mxu0 0
    %1430 = vmatprep.subr.bf16.mxu0 0
    %1431 = vmatpush1.bf16.msra.mxu0 0
    %1432 = vmatprep.subr.bf16.mxu0 0
    %1433 = vmatpush1.bf16.msra.mxu0 0
    %1434 = vmatprep.subr.bf16.mxu0 0
    %1435 = vmatpush1.bf16.msra.mxu0 0
    %1436 = vmatprep.subr.bf16.mxu0 0
    %1437 = vmatpush1.bf16.msra.mxu0 0
    %1438 = vmatprep.subr.bf16.mxu0 0
    %1439 = vmatpush1.bf16.msra.mxu0 0
    %1440 = vmatprep.subr.bf16.mxu0 0
    %1441 = vmatpush1.bf16.msra.mxu0 0
    %1442 = vmatprep.subr.bf16.mxu0 0
    %1443 = vmatpush1.bf16.msra.mxu0 0
    %1444 = vmatprep.subr.bf16.mxu0 0
    %1445 = vmatpush1.bf16.msra.mxu0 0
    %1446 = vmatprep.subr.bf16.mxu0 0
    %1447 = vmatpush1.bf16.msra.mxu0 0
    %1448 = vmatprep.subr.bf16.mxu0 0
    %1449 = vmatpush1.bf16.msra.mxu0 0
    %1450 = vmatprep.subr.bf16.mxu0 0
    %1451 = vmatpush1.bf16.msra.mxu0 0
    %1452 = vmatprep.mubr.bf16.mxu0 0
    %1453 = vmatmul.mubr.bf16.gmra.mrb[0].mxu0 %v1418
    %v1454 = vpop.f32.mrb[0].mxu0
    %v1455 = vadd.f32 %v1301, %v1454
    %v1456 = vpop.f32.mrb[0].mxu0
    %v1457 = vpop.f32.mrb[0].mxu0
    %v1458 = vpop.f32.mrb[0].mxu0
    %1459 = vdwg.mxu0
    %v1460 = vmax.f32 %v1455, 0.0
    %v1461 = vpack.c.bf16 %v1460, %v1460
    %v1470 = vunpack.c.l.b16 %v1286
    %v1471 = vunpack.c.l.b16 %v1287
    %v1472 = vunpack.c.l.b16 %v1288
    %v1473 = vunpack.c.l.b16 %v1289
    %v1474 = vunpack.c.l.b16 %v1290
    %v1475 = vunpack.c.l.b16 %v1291
    %v1476 = vunpack.c.l.b16 %v1292
    %v1477 = vunpack.c.l.b16 %v1293
    %v1478 = vpack.c.b16 %v1471, %v1470
    %v1479 = vpack.c.b16 %v1473, %v1472
    %v1480 = vpack.c.b16 %v1475, %v1474
    %v1481 = vpack.c.b16 %v1477, %v1476
    %v1487 = vsel %vm905, %v1461, 0
    %1489 = vmatprep.subr.bf16.mxu0 0
    %1490 = vmatpush1.bf16.msra.mxu0 %v1478
    %1491 = vmatprep.subr.bf16.mxu0 0
    %1492 = vmatpush1.bf16.msra.mxu0 %v1479
    %1493 = vmatprep.subr.bf16.mxu0 0
    %1494 = vmatpush1.bf16.msra.mxu0 %v1480
    %1495 = vmatprep.subr.bf16.mxu0 0
    %1496 = vmatpush1.bf16.msra.mxu0 %v1481
    %1497 = vmatprep.subr.bf16.mxu0 0
    %1498 = vmatpush1.bf16.msra.mxu0 0
    %1499 = vmatprep.subr.bf16.mxu0 0
    %1500 = vmatpush1.bf16.msra.mxu0 0
    %1501 = vmatprep.subr.bf16.mxu0 0
    %1502 = vmatpush1.bf16.msra.mxu0 0
    %1503 = vmatprep.subr.bf16.mxu0 0
    %1504 = vmatpush1.bf16.msra.mxu0 0
    %1505 = vmatprep.subr.bf16.mxu0 0
    %1506 = vmatpush1.bf16.msra.mxu0 0
    %1507 = vmatprep.subr.bf16.mxu0 0
    %1508 = vmatpush1.bf16.msra.mxu0 0
    %1509 = vmatprep.subr.bf16.mxu0 0
    %1510 = vmatpush1.bf16.msra.mxu0 0
    %1511 = vmatprep.subr.bf16.mxu0 0
    %1512 = vmatpush1.bf16.msra.mxu0 0
    %1513 = vmatprep.subr.bf16.mxu0 0
    %1514 = vmatpush1.bf16.msra.mxu0 0
    %1515 = vmatprep.subr.bf16.mxu0 0
    %1516 = vmatpush1.bf16.msra.mxu0 0
    %1517 = vmatprep.subr.bf16.mxu0 0
    %1518 = vmatpush1.bf16.msra.mxu0 0
    %1519 = vmatprep.subr.bf16.mxu0 0
    %1520 = vmatpush1.bf16.msra.mxu0 0
    %1521 = vmatprep.mubr.bf16.mxu0 0
    %1522 = vmatmul.mubr.bf16.gmra.mrb[0].mxu0 %v1487
    %v1523 = vpop.f32.mrb[0].mxu0
    %v1524 = vadd.f32 %v1303, %v1523
    %v1525 = vpop.f32.mrb[0].mxu0
    %v1526 = vpop.f32.mrb[0].mxu0
    %v1527 = vpop.f32.mrb[0].mxu0
    %1528 = vdwg.mxu0
    %v1529 = vadd.f32 %v1391, %v1524
    %v1530 = vsel %vm1097, %v1529, 0.0
    %1531 = vadd.xlane.f32.xlu0 %v1530
    %v1532 = vpop.xlane.xlu0 %1531
    %v1533 = vmul.f32 %v1532, %v1101
    %v1534 = vsub.f32 %v1529, %v1533
    %v1535 = vmul.f32 %v1534, %v1534
    %v1536 = vsel %vm1097, %v1535, 0.0
    %1537 = vadd.xlane.f32.xlu0 %v1536
    %v1538 = vpop.xlane.xlu0 %1537
    %v1539 = vmul.f32 %v1538, %v1101
    %v1540 = vadd.f32 %v1539, 1e-05
    %v1541 = vrsqrt.pop %v1540
    %v1542 = vmul.f32 %v1534, %v1541
    %v1543 = vmul.f32 %v1542, %v1305
    %v1544 = vadd.f32 %v1543, %v1307
    %s1545 = scalar_lea.vmem %s8, 192
    %v1546 = vld [vmem:[%s1545] sm:$0xf]
    %v1547 = vld [vmem:[%s1545 + $0x4] sm:$0xf]
    %v1548 = vld [vmem:[%s1545 + $0x8] sm:$0xf]
    %v1549 = vld [vmem:[%s1545 + $0xc] sm:$0xf]
    %v1550 = vld [vmem:[%s1545 + $0x10] sm:$0xf]
    %v1551 = vld [vmem:[%s1545 + $0x14] sm:$0xf]
    %v1552 = vld [vmem:[%s1545 + $0x18] sm:$0xf]
    %v1553 = vld [vmem:[%s1545 + $0x1c] sm:$0xf]
    %s1554 = scalar_lea.vmem %s8, 224
    %v1555 = vld [vmem:[%s1554] sm:$0xf]
    %v1556 = vld [vmem:[%s1554 + $0x4] sm:$0xf]
    %v1557 = vld [vmem:[%s1554 + $0x8] sm:$0xf]
    %v1558 = vld [vmem:[%s1554 + $0xc] sm:$0xf]
    %v1559 = vld [vmem:[%s1554 + $0x10] sm:$0xf]
    %v1560 = vld [vmem:[%s1554 + $0x14] sm:$0xf]
    %v1561 = vld [vmem:[%s1554 + $0x18] sm:$0xf]
    %v1562 = vld [vmem:[%s1554 + $0x1c] sm:$0xf]
    %s1563 = scalar_lea.vmem %s8, 256
    %v1564 = vld [vmem:[%s1563] sm:$0xf]
    %v1565 = vld [vmem:[%s1563 + $0x4] sm:$0xf]
    %v1566 = vld [vmem:[%s1563 + $0x8] sm:$0xf]
    %v1567 = vld [vmem:[%s1563 + $0xc] sm:$0xf]
    %v1568 = vld [vmem:[%s1563 + $0x10] sm:$0xf]
    %v1569 = vld [vmem:[%s1563 + $0x14] sm:$0xf]
    %v1570 = vld [vmem:[%s1563 + $0x18] sm:$0xf]
    %v1571 = vld [vmem:[%s1563 + $0x1c] sm:$0xf]
    %s1572 = scalar_lea.vmem %s9, 14
    %v1573 = vld [vmem:[%s1572] sm:$0x1]
    %s1574 = scalar_lea.vmem %s9, 15
    %v1575 = vld [vmem:[%s1574] sm:$0x1]
    %s1576 = scalar_lea.vmem %s9, 16
    %v1577 = vld [vmem:[%s1576] sm:$0x1]
    %s1578 = scalar_lea.vmem %s9, 17
    %v1579 = vld [vmem:[%s1578] sm:$0x1]
    %s1580 = scalar_lea.vmem %s9, 18
    %v1581 = vld [vmem:[%s1580] sm:$0x1]
    %s1582 = scalar_lea.vmem %s9, 19
    %v1583 = vld [vmem:[%s1582] sm:$0x1]
    %s1584 = scalar_lea.vmem %s9, 20
    %v1585 = vld [vmem:[%s1584] sm:$0x1]
    %v1586 = vpack.c.bf16 %v1544, %v1544
    %v1595 = vunpack.c.l.b16 %v1546
    %v1596 = vunpack.c.l.b16 %v1547
    %v1597 = vunpack.c.l.b16 %v1548
    %v1598 = vunpack.c.l.b16 %v1549
    %v1599 = vunpack.c.l.b16 %v1550
    %v1600 = vunpack.c.l.b16 %v1551
    %v1601 = vunpack.c.l.b16 %v1552
    %v1602 = vunpack.c.l.b16 %v1553
    %v1603 = vpack.c.b16 %v1596, %v1595
    %v1604 = vpack.c.b16 %v1598, %v1597
    %v1605 = vpack.c.b16 %v1600, %v1599
    %v1606 = vpack.c.b16 %v1602, %v1601
    %v1612 = vsel %vm905, %v1586, 0
    %1614 = vmatprep.subr.bf16.mxu0 0
    %1615 = vmatpush1.bf16.msra.mxu0 %v1603
    %1616 = vmatprep.subr.bf16.mxu0 0
    %1617 = vmatpush1.bf16.msra.mxu0 %v1604
    %1618 = vmatprep.subr.bf16.mxu0 0
    %1619 = vmatpush1.bf16.msra.mxu0 %v1605
    %1620 = vmatprep.subr.bf16.mxu0 0
    %1621 = vmatpush1.bf16.msra.mxu0 %v1606
    %1622 = vmatprep.subr.bf16.mxu0 0
    %1623 = vmatpush1.bf16.msra.mxu0 0
    %1624 = vmatprep.subr.bf16.mxu0 0
    %1625 = vmatpush1.bf16.msra.mxu0 0
    %1626 = vmatprep.subr.bf16.mxu0 0
    %1627 = vmatpush1.bf16.msra.mxu0 0
    %1628 = vmatprep.subr.bf16.mxu0 0
    %1629 = vmatpush1.bf16.msra.mxu0 0
    %1630 = vmatprep.subr.bf16.mxu0 0
    %1631 = vmatpush1.bf16.msra.mxu0 0
    %1632 = vmatprep.subr.bf16.mxu0 0
    %1633 = vmatpush1.bf16.msra.mxu0 0
    %1634 = vmatprep.subr.bf16.mxu0 0
    %1635 = vmatpush1.bf16.msra.mxu0 0
    %1636 = vmatprep.subr.bf16.mxu0 0
    %1637 = vmatpush1.bf16.msra.mxu0 0
    %1638 = vmatprep.subr.bf16.mxu0 0
    %1639 = vmatpush1.bf16.msra.mxu0 0
    %1640 = vmatprep.subr.bf16.mxu0 0
    %1641 = vmatpush1.bf16.msra.mxu0 0
    %1642 = vmatprep.subr.bf16.mxu0 0
    %1643 = vmatpush1.bf16.msra.mxu0 0
    %1644 = vmatprep.subr.bf16.mxu0 0
    %1645 = vmatpush1.bf16.msra.mxu0 0
    %1646 = vmatprep.mubr.bf16.mxu0 0
    %1647 = vmatmul.mubr.bf16.gmra.mrb[0].mxu0 %v1612
    %v1648 = vpop.f32.mrb[0].mxu0
    %v1649 = vadd.f32 %v1573, %v1648
    %v1650 = vpop.f32.mrb[0].mxu0
    %v1651 = vpop.f32.mrb[0].mxu0
    %v1652 = vpop.f32.mrb[0].mxu0
    %1653 = vdwg.mxu0
    %v1654 = vadd.f32 %v1544, %v1649
    %v1655 = vsel %vm1097, %v1654, 0.0
    %1656 = vadd.xlane.f32.xlu0 %v1655
    %v1657 = vpop.xlane.xlu0 %1656
    %v1658 = vmul.f32 %v1657, %v1101
    %v1659 = vsub.f32 %v1654, %v1658
    %v1660 = vmul.f32 %v1659, %v1659
    %v1661 = vsel %vm1097, %v1660, 0.0
    %1662 = vadd.xlane.f32.xlu0 %v1661
    %v1663 = vpop.xlane.xlu0 %1662
    %v1664 = vmul.f32 %v1663, %v1101
    %v1665 = vadd.f32 %v1664, 1e-05
    %v1666 = vrsqrt.pop %v1665
    %v1667 = vmul.f32 %v1659, %v1666
    %v1668 = vmul.f32 %v1667, %v1575
    %v1669 = vadd.f32 %v1668, %v1577
    %v1670 = vpack.c.bf16 %v1669, %v1669
    %v1679 = vunpack.c.l.b16 %v1555
    %v1680 = vunpack.c.l.b16 %v1556
    %v1681 = vunpack.c.l.b16 %v1557
    %v1682 = vunpack.c.l.b16 %v1558
    %v1683 = vunpack.c.l.b16 %v1559
    %v1684 = vunpack.c.l.b16 %v1560
    %v1685 = vunpack.c.l.b16 %v1561
    %v1686 = vunpack.c.l.b16 %v1562
    %v1687 = vpack.c.b16 %v1680, %v1679
    %v1688 = vpack.c.b16 %v1682, %v1681
    %v1689 = vpack.c.b16 %v1684, %v1683
    %v1690 = vpack.c.b16 %v1686, %v1685
    %v1696 = vsel %vm905, %v1670, 0
    %1698 = vmatprep.subr.bf16.mxu0 0
    %1699 = vmatpush1.bf16.msra.mxu0 %v1687
    %1700 = vmatprep.subr.bf16.mxu0 0
    %1701 = vmatpush1.bf16.msra.mxu0 %v1688
    %1702 = vmatprep.subr.bf16.mxu0 0
    %1703 = vmatpush1.bf16.msra.mxu0 %v1689
    %1704 = vmatprep.subr.bf16.mxu0 0
    %1705 = vmatpush1.bf16.msra.mxu0 %v1690
    %1706 = vmatprep.subr.bf16.mxu0 0
    %1707 = vmatpush1.bf16.msra.mxu0 0
    %1708 = vmatprep.subr.bf16.mxu0 0
    %1709 = vmatpush1.bf16.msra.mxu0 0
    %1710 = vmatprep.subr.bf16.mxu0 0
    %1711 = vmatpush1.bf16.msra.mxu0 0
    %1712 = vmatprep.subr.bf16.mxu0 0
    %1713 = vmatpush1.bf16.msra.mxu0 0
    %1714 = vmatprep.subr.bf16.mxu0 0
    %1715 = vmatpush1.bf16.msra.mxu0 0
    %1716 = vmatprep.subr.bf16.mxu0 0
    %1717 = vmatpush1.bf16.msra.mxu0 0
    %1718 = vmatprep.subr.bf16.mxu0 0
    %1719 = vmatpush1.bf16.msra.mxu0 0
    %1720 = vmatprep.subr.bf16.mxu0 0
    %1721 = vmatpush1.bf16.msra.mxu0 0
    %1722 = vmatprep.subr.bf16.mxu0 0
    %1723 = vmatpush1.bf16.msra.mxu0 0
    %1724 = vmatprep.subr.bf16.mxu0 0
    %1725 = vmatpush1.bf16.msra.mxu0 0
    %1726 = vmatprep.subr.bf16.mxu0 0
    %1727 = vmatpush1.bf16.msra.mxu0 0
    %1728 = vmatprep.subr.bf16.mxu0 0
    %1729 = vmatpush1.bf16.msra.mxu0 0
    %1730 = vmatprep.mubr.bf16.mxu0 0
    %1731 = vmatmul.mubr.bf16.gmra.mrb[0].mxu0 %v1696
    %v1732 = vpop.f32.mrb[0].mxu0
    %v1733 = vadd.f32 %v1579, %v1732
    %v1734 = vpop.f32.mrb[0].mxu0
    %v1735 = vpop.f32.mrb[0].mxu0
    %v1736 = vpop.f32.mrb[0].mxu0
    %1737 = vdwg.mxu0
    %v1738 = vmax.f32 %v1733, 0.0
    %v1739 = vpack.c.bf16 %v1738, %v1738
    %v1748 = vunpack.c.l.b16 %v1564
    %v1749 = vunpack.c.l.b16 %v1565
    %v1750 = vunpack.c.l.b16 %v1566
    %v1751 = vunpack.c.l.b16 %v1567
    %v1752 = vunpack.c.l.b16 %v1568
    %v1753 = vunpack.c.l.b16 %v1569
    %v1754 = vunpack.c.l.b16 %v1570
    %v1755 = vunpack.c.l.b16 %v1571
    %v1756 = vpack.c.b16 %v1749, %v1748
    %v1757 = vpack.c.b16 %v1751, %v1750
    %v1758 = vpack.c.b16 %v1753, %v1752
    %v1759 = vpack.c.b16 %v1755, %v1754
    %v1765 = vsel %vm905, %v1739, 0
    %1767 = vmatprep.subr.bf16.mxu0 0
    %1768 = vmatpush1.bf16.msra.mxu0 %v1756
    %1769 = vmatprep.subr.bf16.mxu0 0
    %1770 = vmatpush1.bf16.msra.mxu0 %v1757
    %1771 = vmatprep.subr.bf16.mxu0 0
    %1772 = vmatpush1.bf16.msra.mxu0 %v1758
    %1773 = vmatprep.subr.bf16.mxu0 0
    %1774 = vmatpush1.bf16.msra.mxu0 %v1759
    %1775 = vmatprep.subr.bf16.mxu0 0
    %1776 = vmatpush1.bf16.msra.mxu0 0
    %1777 = vmatprep.subr.bf16.mxu0 0
    %1778 = vmatpush1.bf16.msra.mxu0 0
    %1779 = vmatprep.subr.bf16.mxu0 0
    %1780 = vmatpush1.bf16.msra.mxu0 0
    %1781 = vmatprep.subr.bf16.mxu0 0
    %1782 = vmatpush1.bf16.msra.mxu0 0
    %1783 = vmatprep.subr.bf16.mxu0 0
    %1784 = vmatpush1.bf16.msra.mxu0 0
    %1785 = vmatprep.subr.bf16.mxu0 0
    %1786 = vmatpush1.bf16.msra.mxu0 0
    %1787 = vmatprep.subr.bf16.mxu0 0
    %1788 = vmatpush1.bf16.msra.mxu0 0
    %1789 = vmatprep.subr.bf16.mxu0 0
    %1790 = vmatpush1.bf16.msra.mxu0 0
    %1791 = vmatprep.subr.bf16.mxu0 0
    %1792 = vmatpush1.bf16.msra.mxu0 0
    %1793 = vmatprep.subr.bf16.mxu0 0
    %1794 = vmatpush1.bf16.msra.mxu0 0
    %1795 = vmatprep.subr.bf16.mxu0 0
    %1796 = vmatpush1.bf16.msra.mxu0 0
    %1797 = vmatprep.subr.bf16.mxu0 0
    %1798 = vmatpush1.bf16.msra.mxu0 0
    %1799 = vmatprep.mubr.bf16.mxu0 0
    %1800 = vmatmul.mubr.bf16.gmra.mrb[0].mxu0 %v1765
    %v1801 = vpop.f32.mrb[0].mxu0
    %v1802 = vadd.f32 %v1581, %v1801
    %v1803 = vpop.f32.mrb[0].mxu0
    %v1804 = vpop.f32.mrb[0].mxu0
    %v1805 = vpop.f32.mrb[0].mxu0
    %1806 = vdwg.mxu0
    %v1807 = vadd.f32 %v1669, %v1802
    %v1808 = vsel %vm1097, %v1807, 0.0
    %1809 = vadd.xlane.f32.xlu0 %v1808
    %v1810 = vpop.xlane.xlu0 %1809
    %v1811 = vmul.f32 %v1810, %v1101
    %v1812 = vsub.f32 %v1807, %v1811
    %v1813 = vmul.f32 %v1812, %v1812
    %v1814 = vsel %vm1097, %v1813, 0.0
    %1815 = vadd.xlane.f32.xlu0 %v1814
    %v1816 = vpop.xlane.xlu0 %1815
    %v1817 = vmul.f32 %v1816, %v1101
    %v1818 = vadd.f32 %v1817, 1e-05
    %v1819 = vrsqrt.pop %v1818
    %v1820 = vmul.f32 %v1812, %v1819
    %v1821 = vmul.f32 %v1820, %v1583
    %v1822 = vadd.f32 %v1821, %v1585
    %s1823 = scalar_lea.vmem %s8, 288
    %v1824 = vld [vmem:[%s1823] sm:$0xf]
    %v1825 = vld [vmem:[%s1823 + $0x4] sm:$0xf]
    %v1826 = vld [vmem:[%s1823 + $0x8] sm:$0xf]
    %v1827 = vld [vmem:[%s1823 + $0xc] sm:$0xf]
    %v1828 = vld [vmem:[%s1823 + $0x10] sm:$0xf]
    %v1829 = vld [vmem:[%s1823 + $0x14] sm:$0xf]
    %v1830 = vld [vmem:[%s1823 + $0x18] sm:$0xf]
    %v1831 = vld [vmem:[%s1823 + $0x1c] sm:$0xf]
    %s1832 = scalar_lea.vmem %s8, 320
    %v1833 = vld [vmem:[%s1832] sm:$0xf]
    %v1834 = vld [vmem:[%s1832 + $0x4] sm:$0xf]
    %v1835 = vld [vmem:[%s1832 + $0x8] sm:$0xf]
    %v1836 = vld [vmem:[%s1832 + $0xc] sm:$0xf]
    %v1837 = vld [vmem:[%s1832 + $0x10] sm:$0xf]
    %v1838 = vld [vmem:[%s1832 + $0x14] sm:$0xf]
    %v1839 = vld [vmem:[%s1832 + $0x18] sm:$0xf]
    %v1840 = vld [vmem:[%s1832 + $0x1c] sm:$0xf]
    %s1841 = scalar_lea.vmem %s8, 352
    %v1842 = vld [vmem:[%s1841] sm:$0xf]
    %v1843 = vld [vmem:[%s1841 + $0x4] sm:$0xf]
    %v1844 = vld [vmem:[%s1841 + $0x8] sm:$0xf]
    %v1845 = vld [vmem:[%s1841 + $0xc] sm:$0xf]
    %v1846 = vld [vmem:[%s1841 + $0x10] sm:$0xf]
    %v1847 = vld [vmem:[%s1841 + $0x14] sm:$0xf]
    %v1848 = vld [vmem:[%s1841 + $0x18] sm:$0xf]
    %v1849 = vld [vmem:[%s1841 + $0x1c] sm:$0xf]
    %s1850 = scalar_lea.vmem %s9, 21
    %v1851 = vld [vmem:[%s1850] sm:$0x1]
    %s1852 = scalar_lea.vmem %s9, 22
    %v1853 = vld [vmem:[%s1852] sm:$0x1]
    %s1854 = scalar_lea.vmem %s9, 23
    %v1855 = vld [vmem:[%s1854] sm:$0x1]
    %s1856 = scalar_lea.vmem %s9, 24
    %v1857 = vld [vmem:[%s1856] sm:$0x1]
    %s1858 = scalar_lea.vmem %s9, 25
    %v1859 = vld [vmem:[%s1858] sm:$0x1]
    %s1860 = scalar_lea.vmem %s9, 26
    %v1861 = vld [vmem:[%s1860] sm:$0x1]
    %s1862 = scalar_lea.vmem %s9, 27
    %v1863 = vld [vmem:[%s1862] sm:$0x1]
    %v1864 = vpack.c.bf16 %v1822, %v1822
    %v1873 = vunpack.c.l.b16 %v1824
    %v1874 = vunpack.c.l.b16 %v1825
    %v1875 = vunpack.c.l.b16 %v1826
    %v1876 = vunpack.c.l.b16 %v1827
    %v1877 = vunpack.c.l.b16 %v1828
    %v1878 = vunpack.c.l.b16 %v1829
    %v1879 = vunpack.c.l.b16 %v1830
    %v1880 = vunpack.c.l.b16 %v1831
    %v1881 = vpack.c.b16 %v1874, %v1873
    %v1882 = vpack.c.b16 %v1876, %v1875
    %v1883 = vpack.c.b16 %v1878, %v1877
    %v1884 = vpack.c.b16 %v1880, %v1879
    %v1890 = vsel %vm905, %v1864, 0
    %1892 = vmatprep.subr.bf16.mxu0 0
    %1893 = vmatpush1.bf16.msra.mxu0 %v1881
    %1894 = vmatprep.subr.bf16.mxu0 0
    %1895 = vmatpush1.bf16.msra.mxu0 %v1882
    %1896 = vmatprep.subr.bf16.mxu0 0
    %1897 = vmatpush1.bf16.msra.mxu0 %v1883
    %1898 = vmatprep.subr.bf16.mxu0 0
    %1899 = vmatpush1.bf16.msra.mxu0 %v1884
    %1900 = vmatprep.subr.bf16.mxu0 0
    %1901 = vmatpush1.bf16.msra.mxu0 0
    %1902 = vmatprep.subr.bf16.mxu0 0
    %1903 = vmatpush1.bf16.msra.mxu0 0
    %1904 = vmatprep.subr.bf16.mxu0 0
    %1905 = vmatpush1.bf16.msra.mxu0 0
    %1906 = vmatprep.subr.bf16.mxu0 0
    %1907 = vmatpush1.bf16.msra.mxu0 0
    %1908 = vmatprep.subr.bf16.mxu0 0
    %1909 = vmatpush1.bf16.msra.mxu0 0
    %1910 = vmatprep.subr.bf16.mxu0 0
    %1911 = vmatpush1.bf16.msra.mxu0 0
    %1912 = vmatprep.subr.bf16.mxu0 0
    %1913 = vmatpush1.bf16.msra.mxu0 0
    %1914 = vmatprep.subr.bf16.mxu0 0
    %1915 = vmatpush1.bf16.msra.mxu0 0
    %1916 = vmatprep.subr.bf16.mxu0 0
    %1917 = vmatpush1.bf16.msra.mxu0 0
    %1918 = vmatprep.subr.bf16.mxu0 0
    %1919 = vmatpush1.bf16.msra.mxu0 0
    %1920 = vmatprep.subr.bf16.mxu0 0
    %1921 = vmatpush1.bf16.msra.mxu0 0
    %1922 = vmatprep.subr.bf16.mxu0 0
    %1923 = vmatpush1.bf16.msra.mxu0 0
    %1924 = vmatprep.mubr.bf16.mxu0 0
    %1925 = vmatmul.mubr.bf16.gmra.mrb[0].mxu0 %v1890
    %v1926 = vpop.f32.mrb[0].mxu0
    %v1927 = vadd.f32 %v1851, %v1926
    %v1928 = vpop.f32.mrb[0].mxu0
    %v1929 = vpop.f32.mrb[0].mxu0
    %v1930 = vpop.f32.mrb[0].mxu0
    %1931 = vdwg.mxu0
    %v1932 = vadd.f32 %v1822, %v1927
    %v1933 = vsel %vm1097, %v1932, 0.0
    %1934 = vadd.xlane.f32.xlu0 %v1933
    %v1935 = vpop.xlane.xlu0 %1934
    %v1936 = vmul.f32 %v1935, %v1101
    %v1937 = vsub.f32 %v1932, %v1936
    %v1938 = vmul.f32 %v1937, %v1937
    %v1939 = vsel %vm1097, %v1938, 0.0
    %1940 = vadd.xlane.f32.xlu0 %v1939
    %v1941 = vpop.xlane.xlu0 %1940
    %v1942 = vmul.f32 %v1941, %v1101
    %v1943 = vadd.f32 %v1942, 1e-05
    %v1944 = vrsqrt.pop %v1943
    %v1945 = vmul.f32 %v1937, %v1944
    %v1946 = vmul.f32 %v1945, %v1853
    %v1947 = vadd.f32 %v1946, %v1855
    %v1948 = vpack.c.bf16 %v1947, %v1947
    %v1957 = vunpack.c.l.b16 %v1833
    %v1958 = vunpack.c.l.b16 %v1834
    %v1959 = vunpack.c.l.b16 %v1835
    %v1960 = vunpack.c.l.b16 %v1836
    %v1961 = vunpack.c.l.b16 %v1837
    %v1962 = vunpack.c.l.b16 %v1838
    %v1963 = vunpack.c.l.b16 %v1839
    %v1964 = vunpack.c.l.b16 %v1840
    %v1965 = vpack.c.b16 %v1958, %v1957
    %v1966 = vpack.c.b16 %v1960, %v1959
    %v1967 = vpack.c.b16 %v1962, %v1961
    %v1968 = vpack.c.b16 %v1964, %v1963
    %v1974 = vsel %vm905, %v1948, 0
    %1976 = vmatprep.subr.bf16.mxu0 0
    %1977 = vmatpush1.bf16.msra.mxu0 %v1965
    %1978 = vmatprep.subr.bf16.mxu0 0
    %1979 = vmatpush1.bf16.msra.mxu0 %v1966
    %1980 = vmatprep.subr.bf16.mxu0 0
    %1981 = vmatpush1.bf16.msra.mxu0 %v1967
    %1982 = vmatprep.subr.bf16.mxu0 0
    %1983 = vmatpush1.bf16.msra.mxu0 %v1968
    %1984 = vmatprep.subr.bf16.mxu0 0
    %1985 = vmatpush1.bf16.msra.mxu0 0
    %1986 = vmatprep.subr.bf16.mxu0 0
    %1987 = vmatpush1.bf16.msra.mxu0 0
    %1988 = vmatprep.subr.bf16.mxu0 0
    %1989 = vmatpush1.bf16.msra.mxu0 0
    %1990 = vmatprep.subr.bf16.mxu0 0
    %1991 = vmatpush1.bf16.msra.mxu0 0
    %1992 = vmatprep.subr.bf16.mxu0 0
    %1993 = vmatpush1.bf16.msra.mxu0 0
    %1994 = vmatprep.subr.bf16.mxu0 0
    %1995 = vmatpush1.bf16.msra.mxu0 0
    %1996 = vmatprep.subr.bf16.mxu0 0
    %1997 = vmatpush1.bf16.msra.mxu0 0
    %1998 = vmatprep.subr.bf16.mxu0 0
    %1999 = vmatpush1.bf16.msra.mxu0 0
    %2000 = vmatprep.subr.bf16.mxu0 0
    %2001 = vmatpush1.bf16.msra.mxu0 0
    %2002 = vmatprep.subr.bf16.mxu0 0
    %2003 = vmatpush1.bf16.msra.mxu0 0
    %2004 = vmatprep.subr.bf16.mxu0 0
    %2005 = vmatpush1.bf16.msra.mxu0 0
    %2006 = vmatprep.subr.bf16.mxu0 0
    %2007 = vmatpush1.bf16.msra.mxu0 0
    %2008 = vmatprep.mubr.bf16.mxu0 0
    %2009 = vmatmul.mubr.bf16.gmra.mrb[0].mxu0 %v1974
    %v2010 = vpop.f32.mrb[0].mxu0
    %v2011 = vadd.f32 %v1857, %v2010
    %v2012 = vpop.f32.mrb[0].mxu0
    %v2013 = vpop.f32.mrb[0].mxu0
    %v2014 = vpop.f32.mrb[0].mxu0
    %2015 = vdwg.mxu0
    %v2016 = vmax.f32 %v2011, 0.0
    %v2017 = vpack.c.bf16 %v2016, %v2016
    %v2026 = vunpack.c.l.b16 %v1842
    %v2027 = vunpack.c.l.b16 %v1843
    %v2028 = vunpack.c.l.b16 %v1844
    %v2029 = vunpack.c.l.b16 %v1845
    %v2030 = vunpack.c.l.b16 %v1846
    %v2031 = vunpack.c.l.b16 %v1847
    %v2032 = vunpack.c.l.b16 %v1848
    %v2033 = vunpack.c.l.b16 %v1849
    %v2034 = vpack.c.b16 %v2027, %v2026
    %v2035 = vpack.c.b16 %v2029, %v2028
    %v2036 = vpack.c.b16 %v2031, %v2030
    %v2037 = vpack.c.b16 %v2033, %v2032
    %v2043 = vsel %vm905, %v2017, 0
    %2045 = vmatprep.subr.bf16.mxu0 0
    %2046 = vmatpush1.bf16.msra.mxu0 %v2034
    %2047 = vmatprep.subr.bf16.mxu0 0
    %2048 = vmatpush1.bf16.msra.mxu0 %v2035
    %2049 = vmatprep.subr.bf16.mxu0 0
    %2050 = vmatpush1.bf16.msra.mxu0 %v2036
    %2051 = vmatprep.subr.bf16.mxu0 0
    %2052 = vmatpush1.bf16.msra.mxu0 %v2037
    %2053 = vmatprep.subr.bf16.mxu0 0
    %2054 = vmatpush1.bf16.msra.mxu0 0
    %2055 = vmatprep.subr.bf16.mxu0 0
    %2056 = vmatpush1.bf16.msra.mxu0 0
    %2057 = vmatprep.subr.bf16.mxu0 0
    %2058 = vmatpush1.bf16.msra.mxu0 0
    %2059 = vmatprep.subr.bf16.mxu0 0
    %2060 = vmatpush1.bf16.msra.mxu0 0
    %2061 = vmatprep.subr.bf16.mxu0 0
    %2062 = vmatpush1.bf16.msra.mxu0 0
    %2063 = vmatprep.subr.bf16.mxu0 0
    %2064 = vmatpush1.bf16.msra.mxu0 0
    %2065 = vmatprep.subr.bf16.mxu0 0
    %2066 = vmatpush1.bf16.msra.mxu0 0
    %2067 = vmatprep.subr.bf16.mxu0 0
    %2068 = vmatpush1.bf16.msra.mxu0 0
    %2069 = vmatprep.subr.bf16.mxu0 0
    %2070 = vmatpush1.bf16.msra.mxu0 0
    %2071 = vmatprep.subr.bf16.mxu0 0
    %2072 = vmatpush1.bf16.msra.mxu0 0
    %2073 = vmatprep.subr.bf16.mxu0 0
    %2074 = vmatpush1.bf16.msra.mxu0 0
    %2075 = vmatprep.subr.bf16.mxu0 0
    %2076 = vmatpush1.bf16.msra.mxu0 0
    %2077 = vmatprep.mubr.bf16.mxu0 0
    %2078 = vmatmul.mubr.bf16.gmra.mrb[0].mxu0 %v2043
    %v2079 = vpop.f32.mrb[0].mxu0
    %v2080 = vadd.f32 %v1859, %v2079
    %v2081 = vpop.f32.mrb[0].mxu0
    %v2082 = vpop.f32.mrb[0].mxu0
    %v2083 = vpop.f32.mrb[0].mxu0
    %2084 = vdwg.mxu0
    %v2085 = vadd.f32 %v1947, %v2080
    %v2086 = vsel %vm1097, %v2085, 0.0
    %2087 = vadd.xlane.f32.xlu0 %v2086
    %v2088 = vpop.xlane.xlu0 %2087
    %v2089 = vmul.f32 %v2088, %v1101
    %v2090 = vsub.f32 %v2085, %v2089
    %v2091 = vmul.f32 %v2090, %v2090
    %v2092 = vsel %vm1097, %v2091, 0.0
    %2093 = vadd.xlane.f32.xlu0 %v2092
    %v2094 = vpop.xlane.xlu0 %2093
    %v2095 = vmul.f32 %v2094, %v1101
    %v2096 = vadd.f32 %v2095, 1e-05
    %v2097 = vrsqrt.pop %v2096
    %v2098 = vmul.f32 %v2090, %v2097
    %v2099 = vmul.f32 %v2098, %v1861
    %v2100 = vadd.f32 %v2099, %v1863
    %v2101 = vld [vmem:[%s10] sm:$0xff]
    %v2102 = vld [vmem:[%s10 + $0x8] sm:$0xff]
    %v2103 = vld [vmem:[%s10 + $0x10] sm:$0xff]
    %v2104 = vld [vmem:[%s10 + $0x18] sm:$0xff]
    %v2105 = vld [vmem:[%s10 + $0x20] sm:$0xff]
    %v2106 = vld [vmem:[%s10 + $0x28] sm:$0xff]
    %v2107 = vld [vmem:[%s10 + $0x30] sm:$0xff]
    %v2108 = vld [vmem:[%s10 + $0x38] sm:$0xff]
    %v2109 = vld [vmem:[%s11] sm:$0x1]
    %v2111 = vsel %vm905, %v2100, 0
    %2113 = vmatprep.subr.mxu0 0.0
    %2114 = vmatpush1.msra.mxu0 %v2101
    %2115 = vmatprep.subr.mxu0 0.0
    %2116 = vmatpush1.msra.mxu0 %v2102
    %2117 = vmatprep.subr.mxu0 0.0
    %2118 = vmatpush1.msra.mxu0 %v2103
    %2119 = vmatprep.subr.mxu0 0.0
    %2120 = vmatpush1.msra.mxu0 %v2104
    %2121 = vmatprep.subr.mxu0 0.0
    %2122 = vmatpush1.msra.mxu0 %v2105
    %2123 = vmatprep.subr.mxu0 0.0
    %2124 = vmatpush1.msra.mxu0 %v2106
    %2125 = vmatprep.subr.mxu0 0.0
    %2126 = vmatpush1.msra.mxu0 %v2107
    %2127 = vmatprep.subr.mxu0 0.0
    %2128 = vmatpush1.msra.mxu0 %v2108
    %2129 = vmatprep.subr.mxu0 0.0
    %2130 = vmatpush1.msra.mxu0 0.0
    %2131 = vmatprep.subr.mxu0 0.0
    %2132 = vmatpush1.msra.mxu0 0.0
    %2133 = vmatprep.subr.mxu0 0.0
    %2134 = vmatpush1.msra.mxu0 0.0
    %2135 = vmatprep.subr.mxu0 0.0
    %2136 = vmatpush1.msra.mxu0 0.0
    %2137 = vmatprep.subr.mxu0 0.0
    %2138 = vmatpush1.msra.mxu0 0.0
    %2139 = vmatprep.subr.mxu0 0.0
    %2140 = vmatpush1.msra.mxu0 0.0
    %2141 = vmatprep.subr.mxu0 0.0
    %2142 = vmatpush1.msra.mxu0 0.0
    %2143 = vmatprep.subr.mxu0 0.0
    %2144 = vmatpush1.msra.mxu0 0.0
    %2145 = vmatprep.subr.mxu0 0.0
    %2146 = vmatpush1.msra.mxu0 0.0
    %2147 = vmatprep.subr.mxu0 0.0
    %2148 = vmatpush1.msra.mxu0 0.0
    %2149 = vmatprep.subr.mxu0 0.0
    %2150 = vmatpush1.msra.mxu0 0.0
    %2151 = vmatprep.subr.mxu0 0.0
    %2152 = vmatpush1.msra.mxu0 0.0
    %2153 = vmatprep.subr.mxu0 0.0
    %2154 = vmatpush1.msra.mxu0 0.0
    %2155 = vmatprep.subr.mxu0 0.0
    %2156 = vmatpush1.msra.mxu0 0.0
    %2157 = vmatprep.subr.mxu0 0.0
    %2158 = vmatpush1.msra.mxu0 0.0
    %2159 = vmatprep.subr.mxu0 0.0
    %2160 = vmatpush1.msra.mxu0 0.0
    %2161 = vmatprep.subr.mxu0 0.0
    %2162 = vmatpush1.msra.mxu0 0.0
    %2163 = vmatprep.subr.mxu0 0.0
    %2164 = vmatpush1.msra.mxu0 0.0
    %2165 = vmatprep.subr.mxu0 0.0
    %2166 = vmatpush1.msra.mxu0 0.0
    %2167 = vmatprep.subr.mxu0 0.0
    %2168 = vmatpush1.msra.mxu0 0.0
    %2169 = vmatprep.subr.mxu0 0.0
    %2170 = vmatpush1.msra.mxu0 0.0
    %2171 = vmatprep.subr.mxu0 0.0
    %2172 = vmatpush1.msra.mxu0 0.0
    %2173 = vmatprep.subr.mxu0 0.0
    %2174 = vmatpush1.msra.mxu0 0.0
    %2175 = vmatprep.subr.mxu0 0.0
    %2176 = vmatpush1.msra.mxu0 0.0
    %2177 = vmatprep.mubr.f32.mxu0 0.0
    %2178 = vmatmul.mubr.f32.gmra.mrb[0].mxu0 %v2111
    %v2179 = vpop.f32.mrb[0].mxu0
    %v2180 = vadd.f32 %v2109, %v2179
    %v2181 = vpop.f32.mrb[0].mxu0
    %2182 = vdwg.mxu0
    %vm2183 = vcmask 8192
    %2184 = vst.msk [vmem:[#allocation3] sm:$0x1] %vm2183, %v2180
    // Predicated region
    $region50: #{cet_s_forward.1} parent=1 // pred_check
      _
    $region51: #{cet_s_forward.1} parent=1 // pred_check_branch
      %2186 = sbr.rel (0) target = $region53
    $region52: #{cet_s_forward.1} parent=1 // pred_region
      %s2188 = ssub.s32 16, 16
      %2189 = vsyncadd [#allocation4], %s2188
      %s2191 = sshll.u32 [#allocation3], 4
      %s2192 = int_to_ptr.vmem [resolvable:$true] %s2191
      %2194 = dma.vmem_to_hbm [thread:$0]  %s2192, 16, %s12, [#allocation4]
    $region53: #{cet_s_forward.1} parent=1 // pred_fallthru
      _
    // Predicated region
    $region54: #{cet_s_forward.1} parent=1 // pred_check
      _
    $region55: #{cet_s_forward.1} parent=1 // pred_check_branch
      %2196 = sbr.rel (0) target = $region57
    $region56: #{cet_s_forward.1} parent=1 // pred_region
      %2197 = dma.done [#allocation4], 16
    $region57: #{cet_s_forward.1} parent=1 // pred_fallthru
      _
    %2198 = vsyncpa [#allocation4], 1

</llo_original>
